<compile_context>
chip_gen: v6e
topology: v6e:2x2x1
jax: 0.10.0
libtpu: 0.0.40
codegen_flags: <defaults>
</compile_context>

<pallas_src>
import functools

import jax
import jax.numpy as jnp
import numpy as np
from jax.experimental import pallas as pl
from jax.experimental.pallas import tpu as pltpu


# --------------------------------- kernel ------------------------------------


def _fused_kernel(x_ref, t_ref, w1_ref, b1_ref, wemb_ref, bemb_ref,
                  w2_ref, w3_ref, b3_ref, wd_ref, bd_ref,
                  o_ref, pad_a_ref, pad_s_ref, *, Nb, H, Hp):
    """One batch block of ResidualBlockDown, entirely in VMEM.

    x_ref   : (Nb*H, W*C)     channel-minor flat input rows
    t_ref   : (Nb, 1, NC)     noise-embedding input
    w1_ref  : (W*C, W*C)      1x1 conv as a block-diagonal matmul
    w2/3_ref: (3*W*C, W*C)    3x3 convs, ky taps concatenated along K
    wd_ref  : (6*W*C, Wo*C)   BOTH stride-2 downsamples stacked along K
                              (per-ky order: conv1 branch, conv3 branch)
    o_ref   : (Ho, Nb*Wo*C)   lane-dense packed  down1(conv1(x)) + down2(...)
    pad_*   : (Nb*Hp, W*C) f32 row-padded per-image slabs (1-row halos)
    """
    WC = x_ref.shape[1]
    Ho = H // 2
    WoC = wd_ref.shape[1]
    cdt = w1_ref.dtype                     # MXU operand dtype
    f32 = jnp.float32

    def swish(v):
        v = v.astype(f32)                  # swish always in f32 (EUP)
        return v * jax.nn.sigmoid(v)

    def store_rows(ref, val):              # val: (Nb*H, WC) f32
        for b in range(Nb):
            ref[b * Hp + 1: b * Hp + 1 + H, :] = val[b * H:(b + 1) * H, :]

    def s1_operand(ref):                   # (Nb*H, 3*WC) in cdt
        imgs = []
        for b in range(Nb):
            base = b * Hp
            imgs.append(jnp.concatenate(
                [ref[base + ky: base + ky + H, :] for ky in range(3)],
                axis=-1))
        return jnp.concatenate(imgs, axis=0).astype(cdt)

    # Zero the 1-row top/bottom halos once; they stay zero across scratch reuse
    # (payload rows hold swish(0)=0-safe activations or conv outputs whose
    # column padding is already folded into the banded weights).
    zrow = jnp.zeros((1, WC), f32)
    for b in range(Nb):
        for ref in (pad_a_ref, pad_s_ref):
            ref[b * Hp: b * Hp + 1, :] = zrow
            ref[b * Hp + H + 1: b * Hp + H + 2, :] = zrow

    x = x_ref[...].astype(f32)                                     # (Nb*H, WC)

    # conv1 (1x1): one block-diagonal matmul over the whole batch block.
    a = jnp.dot(x.astype(cdt), w1_ref[...],
                preferred_element_type=f32) + b1_ref[...]
    store_rows(pad_a_ref, a)

    # swish(x) -> row-padded scratch.
    store_rows(pad_s_ref, swish(x))

    # conv2 (3x3, stride 1): ONE K=3*WC matmul with M = Nb*H.
    h2 = jnp.dot(s1_operand(pad_s_ref), w2_ref[...],
                 preferred_element_type=f32)                       # (Nb*H, WC)

    # Noise embedding (fused Linear) -> one bias row per image; add + swish.
    # TODO(synk): nn.Dropout(p=0.2) is identity here (inference); training-mode
    # stochastic dropout with PyTorch RNG parity is not reproduced.
    for b in range(Nb):
        rb = jnp.dot(swish(t_ref[b]).astype(cdt), wemb_ref[...],
                     preferred_element_type=f32) + bemb_ref[...]   # (1, WC)
        h2b = h2[b * H:(b + 1) * H, :] + rb
        pad_s_ref[b * Hp + 1: b * Hp + 1 + H, :] = swish(h2b)

    # conv3 (3x3, stride 1): ONE K=3*WC matmul; result back into the scratch.
    c3 = jnp.dot(s1_operand(pad_s_ref), w3_ref[...],
                 preferred_element_type=f32) + b3_ref[...]
    store_rows(pad_s_ref, c3)

    # Both stride-2 downsamples + residual add as ONE K=6*WC matmul:
    #   out = down1(a) + down2(c3); row taps via strided (stride-2) loads.
    imgs = []
    for b in range(Nb):
        base = b * Hp
        taps = []
        for ky in range(3):
            taps.append(pad_a_ref[pl.ds(base + ky, Ho, stride=2), :])
            taps.append(pad_s_ref[pl.ds(base + ky, Ho, stride=2), :])
        imgs.append(jnp.concatenate(taps, axis=-1))                # (Ho, 6*WC)
    opd = jnp.concatenate(imgs, axis=0).astype(cdt)                # (Nb*Ho, 6*WC)
    out = jnp.dot(opd, wd_ref[...], preferred_element_type=f32) + bd_ref[...]

    # Pack the Nb images side by side along lanes -> lane-dense store.
    out = jnp.concatenate([out[b * Ho:(b + 1) * Ho, :] for b in range(Nb)],
                          axis=-1)                                 # (Ho, Nb*WoC)
    o_ref[...] = out.astype(o_ref.dtype)


# -------------------- wrapper-side weight preprocessing ----------------------
# Banded block matrices fold the kx taps and the zero column padding of a 3x3
# conv into the weights, so the kernel only does lane-dense matmuls.


def _band_stride1(w, W):
    """w: (3,3,Cin,Cout) -> (3, W*Cin, W*Cout) for a stride-1, pad-1 conv."""
    mats = []
    for ky in range(3):
        m = None
        for kx in range(3):
            sel = jnp.eye(W, W, 1 - kx, dtype=jnp.float32)   # w == w' + kx - 1
            blk = jnp.kron(sel, w[ky, kx].astype(jnp.float32))
            m = blk if m is None else m + blk
        mats.append(m)
    return jnp.stack(mats)


def _band_stride2(w, W):
    """w: (3,3,Cin,Cout) -> (3, W*Cin, (W//2)*Cout) for a stride-2, pad-1 conv."""
    Wo = W // 2
    w_in = jnp.arange(W)[:, None]
    j_out = jnp.arange(Wo)[None, :]
    mats = []
    for ky in range(3):
        m = None
        for kx in range(3):
            sel = (w_in == 2 * j_out + kx - 1).astype(jnp.float32)   # (W, Wo)
            blk = jnp.kron(sel, w[ky, kx].astype(jnp.float32))
            m = blk if m is None else m + blk
        mats.append(m)
    return jnp.stack(mats)


# -------------------------------- module glue ---------------------------------


def init_params(key, in_channels, noise_channels):
    ks = jax.random.split(key, 12)
    s3 = 1.0 / np.sqrt(9 * in_channels)
    s1 = 1.0 / np.sqrt(in_channels)
    se = 1.0 / np.sqrt(noise_channels)
    f32 = jnp.float32
    return dict(
        w_conv1=s1 * jax.random.normal(ks[0], (in_channels, in_channels), f32),
        b_conv1=s1 * jax.random.normal(ks[1], (in_channels,), f32),
        w_down1=s3 * jax.random.normal(ks[2], (3, 3, in_channels, in_channels), f32),
        b_down1=s3 * jax.random.normal(ks[3], (in_channels,), f32),
        w_conv2=s3 * jax.random.normal(ks[4], (3, 3, in_channels, in_channels), f32),
        b_conv2=s3 * jax.random.normal(ks[5], (in_channels,), f32),
        w_emb=se * jax.random.normal(ks[6], (noise_channels, in_channels), f32),
        b_emb=se * jax.random.normal(ks[7], (in_channels,), f32),
        w_conv3=s3 * jax.random.normal(ks[8], (3, 3, in_channels, in_channels), f32),
        b_conv3=s3 * jax.random.normal(ks[9], (in_channels,), f32),
        w_down2=s3 * jax.random.normal(ks[10], (3, 3, in_channels, in_channels), f32),
        b_down2=s3 * jax.random.normal(ks[11], (in_channels,), f32),
    )


def residual_block_down(params, x_nchw, t, *, compute_dtype=jnp.bfloat16,
                        batch_block=None):
    """x_nchw: [N, C, H, W] (PyTorch layout), t: [N, noise_channels]."""
    N, C, H, W = x_nchw.shape
    NC = t.shape[1]
    Ho, Wo = H // 2, W // 2
    WC, WoC = W * C, Wo * C
    assert H % 8 == 0 and W % 2 == 0, "H must be a multiple of 8, W even"
    assert WC % 128 == 0, "W*C must be a multiple of 128 (lane-dense layout)"
    cdt = compute_dtype
    out_dtype = x_nchw.dtype

    Nb = N if batch_block is None else batch_block
    assert N % Nb == 0
    assert Nb == N or (Nb * WoC) % 128 == 0, "packed output must stay lane-aligned"
    Hp = ((H + 2 + 7) // 8) * 8          # aligned per-image row pitch in scratch

    # NCHW -> channel-minor flat rows (N*H, W*C); pure layout plumbing in XLA.
    x_rows = jnp.transpose(x_nchw, (0, 2, 3, 1)).reshape(N * H, WC)
    t3 = t.reshape(N, 1, NC)

    # Wrapper-side weight/bias preprocessing (tiny; constant-folded by XLA).
    w1_blk = jnp.kron(jnp.eye(W, dtype=jnp.float32),
                      params["w_conv1"].astype(jnp.float32)).astype(cdt)      # (WC, WC)
    b1_f = jnp.tile(params["b_conv1"], W).reshape(1, WC).astype(jnp.float32)
    wemb_f = jnp.tile(params["w_emb"], (1, W)).astype(cdt)                    # (NC, WC)
    bemb_f = jnp.tile(params["b_conv2"] + params["b_emb"], W).reshape(1, WC).astype(jnp.float32)
    w2_cat = _band_stride1(params["w_conv2"], W).reshape(3 * WC, WC).astype(cdt)
    w3_cat = _band_stride1(params["w_conv3"], W).reshape(3 * WC, WC).astype(cdt)
    b3_f = jnp.tile(params["b_conv3"], W).reshape(1, WC).astype(jnp.float32)
    d1 = _band_stride2(params["w_down1"], W)                                  # (3, WC, WoC)
    d2 = _band_stride2(params["w_down2"], W)
    wd_comb = jnp.stack([d1, d2], axis=1).reshape(6 * WC, WoC).astype(cdt)    # (6*WC, WoC)
    bd_f = jnp.tile(params["b_down1"] + params["b_down2"], Wo).reshape(1, WoC).astype(jnp.float32)

    def full(shape):
        z = (0,) * len(shape)
        return pl.BlockSpec(shape, lambda n, _z=z: _z)

    kernel = functools.partial(_fused_kernel, Nb=Nb, H=H, Hp=Hp)

    out = pl.pallas_call(
        kernel,
        out_shape=jax.ShapeDtypeStruct((Ho, N * WoC), out_dtype),
        grid=(N // Nb,),
        in_specs=[pl.BlockSpec((Nb * H, WC), lambda n: (n, 0)),
                  pl.BlockSpec((Nb, 1, NC), lambda n: (n, 0, 0)),
                  full((WC, WC)), full((1, WC)),
                  full((NC, WC)), full((1, WC)),
                  full((3 * WC, WC)),
                  full((3 * WC, WC)), full((1, WC)),
                  full((6 * WC, WoC)), full((1, WoC))],
        out_specs=pl.BlockSpec((Ho, Nb * WoC), lambda n: (0, n)),
        scratch_shapes=[pltpu.VMEM((Nb * Hp, WC), jnp.float32),
                        pltpu.VMEM((Nb * Hp, WC), jnp.float32)],
        compiler_params=pltpu.CompilerParams(
            dimension_semantics=("parallel",)),
    )(x_rows, t3, w1_blk, b1_f, wemb_f, bemb_f, w2_cat, w3_cat, b3_f,
      wd_comb, bd_f)

    # (Ho, N*Wo*C) lane-packed -> NCHW
    out = out.reshape(Ho, N, Wo, C)
    return jnp.transpose(out, (1, 3, 0, 2))


# ----------------------------- pure-JAX reference -----------------------------


def ref_forward(params, x_nchw, t):
    x = jnp.transpose(x_nchw, (0, 2, 3, 1))
    silu = lambda z: z * jax.nn.sigmoid(z)
    hi = jax.lax.Precision.HIGHEST

    def conv(xin, w, b, stride):
        pad = ((1, 1), (1, 1)) if w.shape[0] == 3 else "VALID"
        y = jax.lax.conv_general_dilated(
            xin, w, (stride, stride), padding=pad,
            dimension_numbers=("NHWC", "HWIO", "NHWC"), precision=hi)
        return y + b[None, None, None, :]

    a = conv(x, params["w_conv1"][None, None], params["b_conv1"], 1)
    h1 = conv(a, params["w_down1"], params["b_down1"], 2)
    emb = jnp.dot(silu(t), params["w_emb"], precision=hi) + params["b_emb"]
    h2 = conv(silu(x), params["w_conv2"], params["b_conv2"], 1) + emb[:, None, None, :]
    c3 = conv(silu(h2), params["w_conv3"], params["b_conv3"], 1)
    h3 = conv(c3, params["w_down2"], params["b_down2"], 2)
    return jnp.transpose(h1 + h3, (0, 3, 1, 2))


# ------------------------------------ main ------------------------------------


if __name__ == "__main__":
    key = jax.random.PRNGKey(0)
    k_p, k_x, k_t = jax.random.split(key, 3)
    N, C, H, W, NC = 2, 8, 16, 16, 32      # batch, channels, H, W, noise_channels

    params = init_params(k_p, C, NC)
    x = jax.random.normal(k_x, (N, C, H, W), jnp.float32)
    t = jax.random.normal(k_t, (N, NC), jnp.float32)

    ref = np.asarray(ref_forward(params, x, t))

    # f32 MXU-operand path: tight correctness check of the fused math.
    f32_fn = jax.jit(functools.partial(residual_block_down,
                                       compute_dtype=jnp.float32))
    out_f32 = jax.block_until_ready(f32_fn(params, x, t))
    assert out_f32.shape == (N, C, H // 2, W // 2), out_f32.shape
    np.testing.assert_allclose(np.asarray(out_f32), ref, rtol=2e-2, atol=2e-3)

    # bf16 MXU-operand path (default on v5e/v6e/v7x): f32 accumulation,
    # operands quantized once at each dot; tolerance sized for bf16 rounding.
    bf16_fn = jax.jit(residual_block_down)
    out_bf16 = jax.block_until_ready(bf16_fn(params, x, t))
    assert out_bf16.shape == (N, C, H // 2, W // 2), out_bf16.shape
    np.testing.assert_allclose(np.asarray(out_bf16), ref, rtol=1e-1, atol=1e-1)

    print("KERNEL_OK")
</pallas_src>

<mosaic_0001>
module attributes {stable_mosaic.version = 11 : i64} {
  func.func @_fused_kernel(%arg0: i32, %arg1: memref<32x128xf32, #tpu.memory_space<vmem>>, %arg2: memref<2x1x32xf32, #tpu.memory_space<vmem>>, %arg3: memref<128x128xf32, #tpu.memory_space<vmem>>, %arg4: memref<1x128xf32, #tpu.memory_space<vmem>>, %arg5: memref<32x128xf32, #tpu.memory_space<vmem>>, %arg6: memref<1x128xf32, #tpu.memory_space<vmem>>, %arg7: memref<384x128xf32, #tpu.memory_space<vmem>>, %arg8: memref<384x128xf32, #tpu.memory_space<vmem>>, %arg9: memref<1x128xf32, #tpu.memory_space<vmem>>, %arg10: memref<768x64xf32, #tpu.memory_space<vmem>>, %arg11: memref<1x64xf32, #tpu.memory_space<vmem>>, %arg12: memref<8x128xf32, #tpu.memory_space<vmem>>, %arg13: memref<48x128xf32, #tpu.memory_space<vmem>>, %arg14: memref<48x128xf32, #tpu.memory_space<vmem>>) attributes {dimension_semantics = [#tpu.dimension_semantics<parallel>], iteration_bounds = array<i64: 1>, scalar_prefetch = 0 : i64, scratch_operands = 2 : i64, tpu.core_type = #tpu.core_type<tc>, window_params = [{transform_indices = @transform_0, window_bounds = array<i64: 32, 128>}, {transform_indices = @transform_1, window_bounds = array<i64: 2, 1, 32>}, {pipeline_mode = #tpu.pipeline_mode<synchronous>, transform_indices = @transform_2, window_bounds = array<i64: 128, 128>}, {pipeline_mode = #tpu.pipeline_mode<synchronous>, transform_indices = @transform_3, window_bounds = array<i64: 1, 128>}, {pipeline_mode = #tpu.pipeline_mode<synchronous>, transform_indices = @transform_4, window_bounds = array<i64: 32, 128>}, {pipeline_mode = #tpu.pipeline_mode<synchronous>, transform_indices = @transform_5, window_bounds = array<i64: 1, 128>}, {pipeline_mode = #tpu.pipeline_mode<synchronous>, transform_indices = @transform_6, window_bounds = array<i64: 384, 128>}, {pipeline_mode = #tpu.pipeline_mode<synchronous>, transform_indices = @transform_7, window_bounds = array<i64: 384, 128>}, {pipeline_mode = #tpu.pipeline_mode<synchronous>, transform_indices = @transform_8, window_bounds = array<i64: 1, 128>}, {pipeline_mode = #tpu.pipeline_mode<synchronous>, transform_indices = @transform_9, window_bounds = array<i64: 768, 64>}, {pipeline_mode = #tpu.pipeline_mode<synchronous>, transform_indices = @transform_10, window_bounds = array<i64: 1, 64>}, {transform_indices = @transform_11, window_bounds = array<i64: 8, 128>}]} {
    %cst = arith.constant 0.000000e+00 : f32
    %0 = vector.broadcast %cst : f32 to vector<1x128xf32>
    %c0 = arith.constant 0 : index
    %c0_0 = arith.constant 0 : index
    %1 = vector.load %arg13[%c0, %c0_0] : memref<48x128xf32, #tpu.memory_space<vmem>>, vector<1x128xf32>
    tpu.vector_store %arg13[%c0, %c0_0], %0 {strides = array<i32>} : memref<48x128xf32, #tpu.memory_space<vmem>>, vector<1x128xf32>,
    %c17 = arith.constant 17 : index
    %c0_1 = arith.constant 0 : index
    %2 = vector.load %arg13[%c17, %c0_1] : memref<48x128xf32, #tpu.memory_space<vmem>>, vector<1x128xf32>
    tpu.vector_store %arg13[%c17, %c0_1], %0 {strides = array<i32>} : memref<48x128xf32, #tpu.memory_space<vmem>>, vector<1x128xf32>,
    %c0_2 = arith.constant 0 : index
    %c0_3 = arith.constant 0 : index
    %3 = vector.load %arg14[%c0_2, %c0_3] : memref<48x128xf32, #tpu.memory_space<vmem>>, vector<1x128xf32>
    tpu.vector_store %arg14[%c0_2, %c0_3], %0 {strides = array<i32>} : memref<48x128xf32, #tpu.memory_space<vmem>>, vector<1x128xf32>,
    %c17_4 = arith.constant 17 : index
    %c0_5 = arith.constant 0 : index
    %4 = vector.load %arg14[%c17_4, %c0_5] : memref<48x128xf32, #tpu.memory_space<vmem>>, vector<1x128xf32>
    tpu.vector_store %arg14[%c17_4, %c0_5], %0 {strides = array<i32>} : memref<48x128xf32, #tpu.memory_space<vmem>>, vector<1x128xf32>,
    %c24 = arith.constant 24 : index
    %c0_6 = arith.constant 0 : index
    %5 = vector.load %arg13[%c24, %c0_6] : memref<48x128xf32, #tpu.memory_space<vmem>>, vector<1x128xf32>
    tpu.vector_store %arg13[%c24, %c0_6], %0 {strides = array<i32>} : memref<48x128xf32, #tpu.memory_space<vmem>>, vector<1x128xf32>,
    %c41 = arith.constant 41 : index
    %c0_7 = arith.constant 0 : index
    %6 = vector.load %arg13[%c41, %c0_7] : memref<48x128xf32, #tpu.memory_space<vmem>>, vector<1x128xf32>
    tpu.vector_store %arg13[%c41, %c0_7], %0 {strides = array<i32>} : memref<48x128xf32, #tpu.memory_space<vmem>>, vector<1x128xf32>,
    %c24_8 = arith.constant 24 : index
    %c0_9 = arith.constant 0 : index
    %7 = vector.load %arg14[%c24_8, %c0_9] : memref<48x128xf32, #tpu.memory_space<vmem>>, vector<1x128xf32>
    tpu.vector_store %arg14[%c24_8, %c0_9], %0 {strides = array<i32>} : memref<48x128xf32, #tpu.memory_space<vmem>>, vector<1x128xf32>,
    %c41_10 = arith.constant 41 : index
    %c0_11 = arith.constant 0 : index
    %8 = vector.load %arg14[%c41_10, %c0_11] : memref<48x128xf32, #tpu.memory_space<vmem>>, vector<1x128xf32>
    tpu.vector_store %arg14[%c41_10, %c0_11], %0 {strides = array<i32>} : memref<48x128xf32, #tpu.memory_space<vmem>>, vector<1x128xf32>,
    %c0_12 = arith.constant 0 : index
    %c0_13 = arith.constant 0 : index
    %9 = vector.load %arg1[%c0_12, %c0_13] : memref<32x128xf32, #tpu.memory_space<vmem>>, vector<32x128xf32>
    %c0_14 = arith.constant 0 : index
    %c0_15 = arith.constant 0 : index
    %10 = vector.load %arg3[%c0_14, %c0_15] : memref<128x128xf32, #tpu.memory_space<vmem>>, vector<128x128xf32>
    %cst_16 = arith.constant dense<0.000000e+00> : vector<32x128xf32>
    %11 = tpu.matmul %9, %10, %cst_16 {dimension_numbers = #tpu.dot_dimension_numbers<[1], [0], [0], [1], [0, 0, 1, 1], [], []>} : vector<32x128xf32>, vector<128x128xf32>, vector<32x128xf32> -> vector<32x128xf32>
    %c0_17 = arith.constant 0 : index
    %c0_18 = arith.constant 0 : index
    %12 = vector.load %arg4[%c0_17, %c0_18] : memref<1x128xf32, #tpu.memory_space<vmem>>, vector<1x128xf32>
    %13 = vector.broadcast %12 : vector<1x128xf32> to vector<32x128xf32>
    %14 = arith.addf %11, %13 : vector<32x128xf32>
    %15 = vector.extract_strided_slice %14 {offsets = [0, 0], sizes = [16, 128], strides = [1, 1]} : vector<32x128xf32> to vector<16x128xf32>
    %c1 = arith.constant 1 : index
    %c0_19 = arith.constant 0 : index
    %16 = vector.load %arg13[%c1, %c0_19] : memref<48x128xf32, #tpu.memory_space<vmem>>, vector<16x128xf32>
    tpu.vector_store %arg13[%c1, %c0_19], %15 {strides = array<i32>} : memref<48x128xf32, #tpu.memory_space<vmem>>, vector<16x128xf32>,
    %17 = vector.extract_strided_slice %14 {offsets = [16, 0], sizes = [16, 128], strides = [1, 1]} : vector<32x128xf32> to vector<16x128xf32>
    %c25 = arith.constant 25 : index
    %c0_20 = arith.constant 0 : index
    %18 = vector.load %arg13[%c25, %c0_20] : memref<48x128xf32, #tpu.memory_space<vmem>>, vector<16x128xf32>
    tpu.vector_store %arg13[%c25, %c0_20], %17 {strides = array<i32>} : memref<48x128xf32, #tpu.memory_space<vmem>>, vector<16x128xf32>,
    %19 = arith.negf %9 : vector<32x128xf32>
    %20 = math.exp %19 : vector<32x128xf32>
    %cst_21 = arith.constant 1.000000e+00 : f32
    %21 = vector.broadcast %cst_21 : f32 to vector<32x128xf32>
    %22 = arith.addf %21, %20 : vector<32x128xf32>
    %23 = arith.divf %21, %22 : vector<32x128xf32>
    %24 = arith.mulf %9, %23 : vector<32x128xf32>
    %25 = vector.extract_strided_slice %24 {offsets = [0, 0], sizes = [16, 128], strides = [1, 1]} : vector<32x128xf32> to vector<16x128xf32>
    %c1_22 = arith.constant 1 : index
    %c0_23 = arith.constant 0 : index
    %26 = vector.load %arg14[%c1_22, %c0_23] : memref<48x128xf32, #tpu.memory_space<vmem>>, vector<16x128xf32>
    tpu.vector_store %arg14[%c1_22, %c0_23], %25 {strides = array<i32>} : memref<48x128xf32, #tpu.memory_space<vmem>>, vector<16x128xf32>,
    %27 = vector.extract_strided_slice %24 {offsets = [16, 0], sizes = [16, 128], strides = [1, 1]} : vector<32x128xf32> to vector<16x128xf32>
    %c25_24 = arith.constant 25 : index
    %c0_25 = arith.constant 0 : index
    %28 = vector.load %arg14[%c25_24, %c0_25] : memref<48x128xf32, #tpu.memory_space<vmem>>, vector<16x128xf32>
    tpu.vector_store %arg14[%c25_24, %c0_25], %27 {strides = array<i32>} : memref<48x128xf32, #tpu.memory_space<vmem>>, vector<16x128xf32>,
    %c0_26 = arith.constant 0 : index
    %c0_27 = arith.constant 0 : index
    %29 = vector.load %arg14[%c0_26, %c0_27] : memref<48x128xf32, #tpu.memory_space<vmem>>, vector<16x128xf32>
    %c1_28 = arith.constant 1 : index
    %c0_29 = arith.constant 0 : index
    %30 = vector.load %arg14[%c1_28, %c0_29] : memref<48x128xf32, #tpu.memory_space<vmem>>, vector<16x128xf32>
    %c2 = arith.constant 2 : index
    %c0_30 = arith.constant 0 : index
    %31 = vector.load %arg14[%c2, %c0_30] : memref<48x128xf32, #tpu.memory_space<vmem>>, vector<16x128xf32>
    %32 = tpu.concatenate %29, %30, %31 in 1 : vector<16x128xf32>, vector<16x128xf32>, vector<16x128xf32> -> vector<16x384xf32>
    %c24_31 = arith.constant 24 : index
    %c0_32 = arith.constant 0 : index
    %33 = vector.load %arg14[%c24_31, %c0_32] : memref<48x128xf32, #tpu.memory_space<vmem>>, vector<16x128xf32>
    %c25_33 = arith.constant 25 : index
    %c0_34 = arith.constant 0 : index
    %34 = vector.load %arg14[%c25_33, %c0_34] : memref<48x128xf32, #tpu.memory_space<vmem>>, vector<16x128xf32>
    %c26 = arith.constant 26 : index
    %c0_35 = arith.constant 0 : index
    %35 = vector.load %arg14[%c26, %c0_35] : memref<48x128xf32, #tpu.memory_space<vmem>>, vector<16x128xf32>
    %36 = tpu.concatenate %33, %34, %35 in 1 : vector<16x128xf32>, vector<16x128xf32>, vector<16x128xf32> -> vector<16x384xf32>
    %37 = tpu.concatenate %32, %36 in 0 : vector<16x384xf32>, vector<16x384xf32> -> vector<32x384xf32>
    %c0_36 = arith.constant 0 : index
    %c0_37 = arith.constant 0 : index
    %38 = vector.load %arg7[%c0_36, %c0_37] : memref<384x128xf32, #tpu.memory_space<vmem>>, vector<384x128xf32>
    %cst_38 = arith.constant dense<0.000000e+00> : vector<32x128xf32>
    %39 = tpu.matmul %37, %38, %cst_38 {dimension_numbers = #tpu.dot_dimension_numbers<[1], [0], [0], [1], [0, 0, 1, 1], [], []>} : vector<32x384xf32>, vector<384x128xf32>, vector<32x128xf32> -> vector<32x128xf32>
    %c0_39 = arith.constant 0 : index
    %c0_40 = arith.constant 0 : index
    %c0_41 = arith.constant 0 : index
    %40 = vector.load %arg2[%c0_39, %c0_40, %c0_41] : memref<2x1x32xf32, #tpu.memory_space<vmem>>, vector<1x1x32xf32>
    %41 = vector.shape_cast %40 : vector<1x1x32xf32> to vector<1x32xf32>
    %42 = arith.negf %41 : vector<1x32xf32>
    %43 = math.exp %42 : vector<1x32xf32>
    %cst_42 = arith.constant 1.000000e+00 : f32
    %44 = vector.broadcast %cst_42 : f32 to vector<1x32xf32>
    %45 = arith.addf %44, %43 : vector<1x32xf32>
    %46 = arith.divf %44, %45 : vector<1x32xf32>
    %47 = arith.mulf %41, %46 : vector<1x32xf32>
    %c0_43 = arith.constant 0 : index
    %c0_44 = arith.constant 0 : index
    %48 = vector.load %arg5[%c0_43, %c0_44] : memref<32x128xf32, #tpu.memory_space<vmem>>, vector<32x128xf32>
    %cst_45 = arith.constant dense<0.000000e+00> : vector<1x128xf32>
    %49 = tpu.matmul %47, %48, %cst_45 {dimension_numbers = #tpu.dot_dimension_numbers<[1], [0], [0], [1], [0, 0, 1, 1], [], []>} : vector<1x32xf32>, vector<32x128xf32>, vector<1x128xf32> -> vector<1x128xf32>
    %c0_46 = arith.constant 0 : index
    %c0_47 = arith.constant 0 : index
    %50 = vector.load %arg6[%c0_46, %c0_47] : memref<1x128xf32, #tpu.memory_space<vmem>>, vector<1x128xf32>
    %51 = arith.addf %49, %50 : vector<1x128xf32>
    %52 = vector.extract_strided_slice %39 {offsets = [0, 0], sizes = [16, 128], strides = [1, 1]} : vector<32x128xf32> to vector<16x128xf32>
    %53 = vector.broadcast %51 : vector<1x128xf32> to vector<16x128xf32>
    %54 = arith.addf %52, %53 : vector<16x128xf32>
    %55 = arith.negf %54 : vector<16x128xf32>
    %56 = math.exp %55 : vector<16x128xf32>
    %cst_48 = arith.constant 1.000000e+00 : f32
    %57 = vector.broadcast %cst_48 : f32 to vector<16x128xf32>
    %58 = arith.addf %57, %56 : vector<16x128xf32>
    %59 = arith.divf %57, %58 : vector<16x128xf32>
    %60 = arith.mulf %54, %59 : vector<16x128xf32>
    %c1_49 = arith.constant 1 : index
    %c0_50 = arith.constant 0 : index
    %61 = vector.load %arg14[%c1_49, %c0_50] : memref<48x128xf32, #tpu.memory_space<vmem>>, vector<16x128xf32>
    tpu.vector_store %arg14[%c1_49, %c0_50], %60 {strides = array<i32>} : memref<48x128xf32, #tpu.memory_space<vmem>>, vector<16x128xf32>,
    %c1_51 = arith.constant 1 : index
    %c0_52 = arith.constant 0 : index
    %c0_53 = arith.constant 0 : index
    %62 = vector.load %arg2[%c1_51, %c0_52, %c0_53] : memref<2x1x32xf32, #tpu.memory_space<vmem>>, vector<1x1x32xf32>
    %63 = vector.shape_cast %62 : vector<1x1x32xf32> to vector<1x32xf32>
    %64 = arith.negf %63 : vector<1x32xf32>
    %65 = math.exp %64 : vector<1x32xf32>
    %cst_54 = arith.constant 1.000000e+00 : f32
    %66 = vector.broadcast %cst_54 : f32 to vector<1x32xf32>
    %67 = arith.addf %66, %65 : vector<1x32xf32>
    %68 = arith.divf %66, %67 : vector<1x32xf32>
    %69 = arith.mulf %63, %68 : vector<1x32xf32>
    %c0_55 = arith.constant 0 : index
    %c0_56 = arith.constant 0 : index
    %70 = vector.load %arg5[%c0_55, %c0_56] : memref<32x128xf32, #tpu.memory_space<vmem>>, vector<32x128xf32>
    %cst_57 = arith.constant dense<0.000000e+00> : vector<1x128xf32>
    %71 = tpu.matmul %69, %70, %cst_57 {dimension_numbers = #tpu.dot_dimension_numbers<[1], [0], [0], [1], [0, 0, 1, 1], [], []>} : vector<1x32xf32>, vector<32x128xf32>, vector<1x128xf32> -> vector<1x128xf32>
    %c0_58 = arith.constant 0 : index
    %c0_59 = arith.constant 0 : index
    %72 = vector.load %arg6[%c0_58, %c0_59] : memref<1x128xf32, #tpu.memory_space<vmem>>, vector<1x128xf32>
    %73 = arith.addf %71, %72 : vector<1x128xf32>
    %74 = vector.extract_strided_slice %39 {offsets = [16, 0], sizes = [16, 128], strides = [1, 1]} : vector<32x128xf32> to vector<16x128xf32>
    %75 = vector.broadcast %73 : vector<1x128xf32> to vector<16x128xf32>
    %76 = arith.addf %74, %75 : vector<16x128xf32>
    %77 = arith.negf %76 : vector<16x128xf32>
    %78 = math.exp %77 : vector<16x128xf32>
    %cst_60 = arith.constant 1.000000e+00 : f32
    %79 = vector.broadcast %cst_60 : f32 to vector<16x128xf32>
    %80 = arith.addf %79, %78 : vector<16x128xf32>
    %81 = arith.divf %79, %80 : vector<16x128xf32>
    %82 = arith.mulf %76, %81 : vector<16x128xf32>
    %c25_61 = arith.constant 25 : index
    %c0_62 = arith.constant 0 : index
    %83 = vector.load %arg14[%c25_61, %c0_62] : memref<48x128xf32, #tpu.memory_space<vmem>>, vector<16x128xf32>
    tpu.vector_store %arg14[%c25_61, %c0_62], %82 {strides = array<i32>} : memref<48x128xf32, #tpu.memory_space<vmem>>, vector<16x128xf32>,
    %c0_63 = arith.constant 0 : index
    %c0_64 = arith.constant 0 : index
    %84 = vector.load %arg14[%c0_63, %c0_64] : memref<48x128xf32, #tpu.memory_space<vmem>>, vector<16x128xf32>
    %c1_65 = arith.constant 1 : index
    %c0_66 = arith.constant 0 : index
    %85 = vector.load %arg14[%c1_65, %c0_66] : memref<48x128xf32, #tpu.memory_space<vmem>>, vector<16x128xf32>
    %c2_67 = arith.constant 2 : index
    %c0_68 = arith.constant 0 : index
    %86 = vector.load %arg14[%c2_67, %c0_68] : memref<48x128xf32, #tpu.memory_space<vmem>>, vector<16x128xf32>
    %87 = tpu.concatenate %84, %85, %86 in 1 : vector<16x128xf32>, vector<16x128xf32>, vector<16x128xf32> -> vector<16x384xf32>
    %c24_69 = arith.constant 24 : index
    %c0_70 = arith.constant 0 : index
    %88 = vector.load %arg14[%c24_69, %c0_70] : memref<48x128xf32, #tpu.memory_space<vmem>>, vector<16x128xf32>
    %c25_71 = arith.constant 25 : index
    %c0_72 = arith.constant 0 : index
    %89 = vector.load %arg14[%c25_71, %c0_72] : memref<48x128xf32, #tpu.memory_space<vmem>>, vector<16x128xf32>
    %c26_73 = arith.constant 26 : index
    %c0_74 = arith.constant 0 : index
    %90 = vector.load %arg14[%c26_73, %c0_74] : memref<48x128xf32, #tpu.memory_space<vmem>>, vector<16x128xf32>
    %91 = tpu.concatenate %88, %89, %90 in 1 : vector<16x128xf32>, vector<16x128xf32>, vector<16x128xf32> -> vector<16x384xf32>
    %92 = tpu.concatenate %87, %91 in 0 : vector<16x384xf32>, vector<16x384xf32> -> vector<32x384xf32>
    %c0_75 = arith.constant 0 : index
    %c0_76 = arith.constant 0 : index
    %93 = vector.load %arg8[%c0_75, %c0_76] : memref<384x128xf32, #tpu.memory_space<vmem>>, vector<384x128xf32>
    %cst_77 = arith.constant dense<0.000000e+00> : vector<32x128xf32>
    %94 = tpu.matmul %92, %93, %cst_77 {dimension_numbers = #tpu.dot_dimension_numbers<[1], [0], [0], [1], [0, 0, 1, 1], [], []>} : vector<32x384xf32>, vector<384x128xf32>, vector<32x128xf32> -> vector<32x128xf32>
    %c0_78 = arith.constant 0 : index
    %c0_79 = arith.constant 0 : index
    %95 = vector.load %arg9[%c0_78, %c0_79] : memref<1x128xf32, #tpu.memory_space<vmem>>, vector<1x128xf32>
    %96 = vector.broadcast %95 : vector<1x128xf32> to vector<32x128xf32>
    %97 = arith.addf %94, %96 : vector<32x128xf32>
    %98 = vector.extract_strided_slice %97 {offsets = [0, 0], sizes = [16, 128], strides = [1, 1]} : vector<32x128xf32> to vector<16x128xf32>
    %c1_80 = arith.constant 1 : index
    %c0_81 = arith.constant 0 : index
    %99 = vector.load %arg14[%c1_80, %c0_81] : memref<48x128xf32, #tpu.memory_space<vmem>>, vector<16x128xf32>
    tpu.vector_store %arg14[%c1_80, %c0_81], %98 {strides = array<i32>} : memref<48x128xf32, #tpu.memory_space<vmem>>, vector<16x128xf32>,
    %100 = vector.extract_strided_slice %97 {offsets = [16, 0], sizes = [16, 128], strides = [1, 1]} : vector<32x128xf32> to vector<16x128xf32>
    %c25_82 = arith.constant 25 : index
    %c0_83 = arith.constant 0 : index
    %101 = vector.load %arg14[%c25_82, %c0_83] : memref<48x128xf32, #tpu.memory_space<vmem>>, vector<16x128xf32>
    tpu.vector_store %arg14[%c25_82, %c0_83], %100 {strides = array<i32>} : memref<48x128xf32, #tpu.memory_space<vmem>>, vector<16x128xf32>,
    %c0_84 = arith.constant 0 : index
    %c0_85 = arith.constant 0 : index
    %102 = tpu.strided_load %arg13[%c0_84, %c0_85] {strides = array<i32: 2, 1>} : memref<48x128xf32, #tpu.memory_space<vmem>>, vector<8x128xf32>
    %c0_86 = arith.constant 0 : index
    %c0_87 = arith.constant 0 : index
    %103 = tpu.strided_load %arg14[%c0_86, %c0_87] {strides = array<i32: 2, 1>} : memref<48x128xf32, #tpu.memory_space<vmem>>, vector<8x128xf32>
    %c1_88 = arith.constant 1 : index
    %c0_89 = arith.constant 0 : index
    %104 = tpu.strided_load %arg13[%c1_88, %c0_89] {strides = array<i32: 2, 1>} : memref<48x128xf32, #tpu.memory_space<vmem>>, vector<8x128xf32>
    %c1_90 = arith.constant 1 : index
    %c0_91 = arith.constant 0 : index
    %105 = tpu.strided_load %arg14[%c1_90, %c0_91] {strides = array<i32: 2, 1>} : memref<48x128xf32, #tpu.memory_space<vmem>>, vector<8x128xf32>
    %c2_92 = arith.constant 2 : index
    %c0_93 = arith.constant 0 : index
    %106 = tpu.strided_load %arg13[%c2_92, %c0_93] {strides = array<i32: 2, 1>} : memref<48x128xf32, #tpu.memory_space<vmem>>, vector<8x128xf32>
    %c2_94 = arith.constant 2 : index
    %c0_95 = arith.constant 0 : index
    %107 = tpu.strided_load %arg14[%c2_94, %c0_95] {strides = array<i32: 2, 1>} : memref<48x128xf32, #tpu.memory_space<vmem>>, vector<8x128xf32>
    %108 = tpu.concatenate %102, %103, %104, %105, %106, %107 in 1 : vector<8x128xf32>, vector<8x128xf32>, vector<8x128xf32>, vector<8x128xf32>, vector<8x128xf32>, vector<8x128xf32> -> vector<8x768xf32>
    %c24_96 = arith.constant 24 : index
    %c0_97 = arith.constant 0 : index
    %109 = tpu.strided_load %arg13[%c24_96, %c0_97] {strides = array<i32: 2, 1>} : memref<48x128xf32, #tpu.memory_space<vmem>>, vector<8x128xf32>
    %c24_98 = arith.constant 24 : index
    %c0_99 = arith.constant 0 : index
    %110 = tpu.strided_load %arg14[%c24_98, %c0_99] {strides = array<i32: 2, 1>} : memref<48x128xf32, #tpu.memory_space<vmem>>, vector<8x128xf32>
    %c25_100 = arith.constant 25 : index
    %c0_101 = arith.constant 0 : index
    %111 = tpu.strided_load %arg13[%c25_100, %c0_101] {strides = array<i32: 2, 1>} : memref<48x128xf32, #tpu.memory_space<vmem>>, vector<8x128xf32>
    %c25_102 = arith.constant 25 : index
    %c0_103 = arith.constant 0 : index
    %112 = tpu.strided_load %arg14[%c25_102, %c0_103] {strides = array<i32: 2, 1>} : memref<48x128xf32, #tpu.memory_space<vmem>>, vector<8x128xf32>
    %c26_104 = arith.constant 26 : index
    %c0_105 = arith.constant 0 : index
    %113 = tpu.strided_load %arg13[%c26_104, %c0_105] {strides = array<i32: 2, 1>} : memref<48x128xf32, #tpu.memory_space<vmem>>, vector<8x128xf32>
    %c26_106 = arith.constant 26 : index
    %c0_107 = arith.constant 0 : index
    %114 = tpu.strided_load %arg14[%c26_106, %c0_107] {strides = array<i32: 2, 1>} : memref<48x128xf32, #tpu.memory_space<vmem>>, vector<8x128xf32>
    %115 = tpu.concatenate %109, %110, %111, %112, %113, %114 in 1 : vector<8x128xf32>, vector<8x128xf32>, vector<8x128xf32>, vector<8x128xf32>, vector<8x128xf32>, vector<8x128xf32> -> vector<8x768xf32>
    %116 = tpu.concatenate %108, %115 in 0 : vector<8x768xf32>, vector<8x768xf32> -> vector<16x768xf32>
    %c0_108 = arith.constant 0 : index
    %c0_109 = arith.constant 0 : index
    %117 = vector.load %arg10[%c0_108, %c0_109] : memref<768x64xf32, #tpu.memory_space<vmem>>, vector<768x64xf32>
    %cst_110 = arith.constant dense<0.000000e+00> : vector<16x64xf32>
    %118 = tpu.matmul %116, %117, %cst_110 {dimension_numbers = #tpu.dot_dimension_numbers<[1], [0], [0], [1], [0, 0, 1, 1], [], []>} : vector<16x768xf32>, vector<768x64xf32>, vector<16x64xf32> -> vector<16x64xf32>
    %c0_111 = arith.constant 0 : index
    %c0_112 = arith.constant 0 : index
    %119 = vector.load %arg11[%c0_111, %c0_112] : memref<1x64xf32, #tpu.memory_space<vmem>>, vector<1x64xf32>
    %120 = vector.broadcast %119 : vector<1x64xf32> to vector<16x64xf32>
    %121 = arith.addf %118, %120 : vector<16x64xf32>
    %122 = vector.extract_strided_slice %121 {offsets = [0, 0], sizes = [8, 64], strides = [1, 1]} : vector<16x64xf32> to vector<8x64xf32>
    %123 = vector.extract_strided_slice %121 {offsets = [8, 0], sizes = [8, 64], strides = [1, 1]} : vector<16x64xf32> to vector<8x64xf32>
    %124 = tpu.concatenate %122, %123 in 1 : vector<8x64xf32>, vector<8x64xf32> -> vector<8x128xf32>
    %c0_113 = arith.constant 0 : index
    %c0_114 = arith.constant 0 : index
    %125 = vector.load %arg12[%c0_113, %c0_114] : memref<8x128xf32, #tpu.memory_space<vmem>>, vector<8x128xf32>
    tpu.vector_store %arg12[%c0_113, %c0_114], %124 {strides = array<i32>} : memref<8x128xf32, #tpu.memory_space<vmem>>, vector<8x128xf32>,
    return
  }
  func.func @transform_0(%arg0: i32) -> (i32, i32) {
    %c0_i32 = arith.constant 0 : i32
    %c0_i32_0 = arith.constant 0 : i32
    return %arg0, %c0_i32 : i32, i32
  }
  func.func @transform_1(%arg0: i32) -> (i32, i32, i32) {
    %c0_i32 = arith.constant 0 : i32
    %c0_i32_0 = arith.constant 0 : i32
    %c0_i32_1 = arith.constant 0 : i32
    return %arg0, %c0_i32, %c0_i32_0 : i32, i32, i32
  }
  func.func @transform_2(%arg0: i32) -> (i32, i32) {
    %c0_i32 = arith.constant 0 : i32
    %c0_i32_0 = arith.constant 0 : i32
    %c0_i32_1 = arith.constant 0 : i32
    return %c0_i32, %c0_i32_0 : i32, i32
  }
  func.func @transform_3(%arg0: i32) -> (i32, i32) {
    %c0_i32 = arith.constant 0 : i32
    %c0_i32_0 = arith.constant 0 : i32
    %c0_i32_1 = arith.constant 0 : i32
    return %c0_i32, %c0_i32_0 : i32, i32
  }
  func.func @transform_4(%arg0: i32) -> (i32, i32) {
    %c0_i32 = arith.constant 0 : i32
    %c0_i32_0 = arith.constant 0 : i32
    %c0_i32_1 = arith.constant 0 : i32
    return %c0_i32, %c0_i32_0 : i32, i32
  }
  func.func @transform_5(%arg0: i32) -> (i32, i32) {
    %c0_i32 = arith.constant 0 : i32
    %c0_i32_0 = arith.constant 0 : i32
    %c0_i32_1 = arith.constant 0 : i32
    return %c0_i32, %c0_i32_0 : i32, i32
  }
  func.func @transform_6(%arg0: i32) -> (i32, i32) {
    %c0_i32 = arith.constant 0 : i32
    %c0_i32_0 = arith.constant 0 : i32
    %c0_i32_1 = arith.constant 0 : i32
    return %c0_i32, %c0_i32_0 : i32, i32
  }
  func.func @transform_7(%arg0: i32) -> (i32, i32) {
    %c0_i32 = arith.constant 0 : i32
    %c0_i32_0 = arith.constant 0 : i32
    %c0_i32_1 = arith.constant 0 : i32
    return %c0_i32, %c0_i32_0 : i32, i32
  }
  func.func @transform_8(%arg0: i32) -> (i32, i32) {
    %c0_i32 = arith.constant 0 : i32
    %c0_i32_0 = arith.constant 0 : i32
    %c0_i32_1 = arith.constant 0 : i32
    return %c0_i32, %c0_i32_0 : i32, i32
  }
  func.func @transform_9(%arg0: i32) -> (i32, i32) {
    %c0_i32 = arith.constant 0 : i32
    %c0_i32_0 = arith.constant 0 : i32
    %c0_i32_1 = arith.constant 0 : i32
    return %c0_i32, %c0_i32_0 : i32, i32
  }
  func.func @transform_10(%arg0: i32) -> (i32, i32) {
    %c0_i32 = arith.constant 0 : i32
    %c0_i32_0 = arith.constant 0 : i32
    %c0_i32_1 = arith.constant 0 : i32
    return %c0_i32, %c0_i32_0 : i32, i32
  }
  func.func @transform_11(%arg0: i32) -> (i32, i32) {
    %c0_i32 = arith.constant 0 : i32
    %c0_i32_0 = arith.constant 0 : i32
    return %c0_i32, %arg0 : i32, i32
  }
}

</mosaic_0001>

<llo_original>
// kernel: tile.28
$region0: #{tile.28}
  #allocation0 [shape = 's32[1]{0}', space=sflag, size = 0x4, scoped, tag = 'scoped memory for tile.28']
  %s0 = inlined_call_operand.vmem [shape: f32[8], index: 0, kind: input, shape index: {}]
  %s1 = inlined_call_operand.vmem [shape: f32[16,8], index: 1, kind: output, shape index: {}]
  // Predicated region
  $region2: #{tile.28} parent=0 // pred_check
    _
  $region3: #{tile.28} parent=0 // pred_check_branch
    %3 = sbr.rel (0) target = $region5
  $region4: #{tile.28} parent=0 // pred_region
    _
  $region5: #{tile.28} parent=0 // pred_fallthru
    _
  %v4 = vld [vmem:[%s0] ss:$0 sm:$0xff]
  %5 = vst [vmem:[%s1] sm:$0xff] %v4
  %s6 = scalar_lea.vmem %s1, 8
  %7 = vst [vmem:[%s6] sm:$0xff] %v4

// kernel: tile.29
$region0: #{tile.29}
  %s0 = inlined_call_operand.vmem [shape: f32[16,8], index: 0, kind: input, shape index: {}]
  %s1 = inlined_call_operand.vmem [shape: f32[1,128], index: 1, kind: output, shape index: {}]
  $region1: #{tile.29} parent=0
    #allocation0 [shape = 'u8[4096]{0}', space=vmem, size = 0x1000, scoped, tag = 'scoped mem for output reshape']
    %v2 = vld [vmem:[%s0] sm:$0x1]
    %vm3 = vcmask 64512
    %4 = vst.msk [vmem:[#allocation0] sm:$0x1] %vm3, %v2
    %s5 = scalar_lea.vmem %s0, 15
    %v6 = vld [vmem:[%s5] sm:$0x1]
    %7 = vrot.lane.b32.xlu0 %v6, 120
    %v8 = vpop.permute.xlu0 %7
    %vm9 = vcmask 1048512
    %10 = vst.msk [vmem:[#allocation0] sm:$0x1] %vm9, %v8
    %s11 = scalar_lea.vmem %s0, 14
    %v12 = vld [vmem:[%s11] sm:$0x1]
    %13 = vrot.lane.b32.xlu0 %v12, 112
    %v14 = vpop.permute.xlu0 %13
    %vm15 = vcmask 982912
    %16 = vst.msk [vmem:[#allocation0] sm:$0x1] %vm15, %v14
    %s17 = scalar_lea.vmem %s0, 13
    %v18 = vld [vmem:[%s17] sm:$0x1]
    %19 = vrot.lane.b32.xlu0 %v18, 104
    %v20 = vpop.permute.xlu0 %19
    %vm21 = vcmask 917312
    %22 = vst.msk [vmem:[#allocation0] sm:$0x1] %vm21, %v20
    %s23 = scalar_lea.vmem %s0, 12
    %v24 = vld [vmem:[%s23] sm:$0x1]
    %25 = vrot.lane.b32.xlu0 %v24, 96
    %v26 = vpop.permute.xlu0 %25
    %vm27 = vcmask 851712
    %28 = vst.msk [vmem:[#allocation0] sm:$0x1] %vm27, %v26
    %s29 = scalar_lea.vmem %s0, 11
    %v30 = vld [vmem:[%s29] sm:$0x1]
    %31 = vrot.lane.b32.xlu0 %v30, 88
    %v32 = vpop.permute.xlu0 %31
    %vm33 = vcmask 786112
    %34 = vst.msk [vmem:[#allocation0] sm:$0x1] %vm33, %v32
    %s35 = scalar_lea.vmem %s0, 10
    %v36 = vld [vmem:[%s35] sm:$0x1]
    %37 = vrot.lane.b32.xlu0 %v36, 80
    %v38 = vpop.permute.xlu0 %37
    %vm39 = vcmask 720512
    %40 = vst.msk [vmem:[#allocation0] sm:$0x1] %vm39, %v38
    %s41 = scalar_lea.vmem %s0, 9
    %v42 = vld [vmem:[%s41] sm:$0x1]
    %43 = vrot.lane.b32.xlu0 %v42, 72
    %v44 = vpop.permute.xlu0 %43
    %vm45 = vcmask 654912
    %46 = vst.msk [vmem:[#allocation0] sm:$0x1] %vm45, %v44
    %s47 = scalar_lea.vmem %s0, 8
    %v48 = vld [vmem:[%s47] sm:$0x1]
    %49 = vrot.lane.b32.xlu0 %v48, 64
    %v50 = vpop.permute.xlu0 %49
    %vm51 = vcmask 589312
    %52 = vst.msk [vmem:[#allocation0] sm:$0x1] %vm51, %v50
    %s53 = scalar_lea.vmem %s0, 7
    %v54 = vld [vmem:[%s53] sm:$0x1]
    %55 = vrot.lane.b32.xlu0 %v54, 56
    %v56 = vpop.permute.xlu0 %55
    %vm57 = vcmask 523712
    %58 = vst.msk [vmem:[#allocation0] sm:$0x1] %vm57, %v56
    %s59 = scalar_lea.vmem %s0, 6
    %v60 = vld [vmem:[%s59] sm:$0x1]
    %61 = vrot.lane.b32.xlu0 %v60, 48
    %v62 = vpop.permute.xlu0 %61
    %vm63 = vcmask 458112
    %64 = vst.msk [vmem:[#allocation0] sm:$0x1] %vm63, %v62
    %s65 = scalar_lea.vmem %s0, 5
    %v66 = vld [vmem:[%s65] sm:$0x1]
    %67 = vrot.lane.b32.xlu0 %v66, 40
    %v68 = vpop.permute.xlu0 %67
    %vm69 = vcmask 392512
    %70 = vst.msk [vmem:[#allocation0] sm:$0x1] %vm69, %v68
    %s71 = scalar_lea.vmem %s0, 4
    %v72 = vld [vmem:[%s71] sm:$0x1]
    %73 = vrot.lane.b32.xlu0 %v72, 32
    %v74 = vpop.permute.xlu0 %73
    %vm75 = vcmask 326912
    %76 = vst.msk [vmem:[#allocation0] sm:$0x1] %vm75, %v74
    %s77 = scalar_lea.vmem %s0, 3
    %v78 = vld [vmem:[%s77] sm:$0x1]
    %79 = vrot.lane.b32.xlu0 %v78, 24
    %v80 = vpop.permute.xlu0 %79
    %vm81 = vcmask 261312
    %82 = vst.msk [vmem:[#allocation0] sm:$0x1] %vm81, %v80
    %s83 = scalar_lea.vmem %s0, 2
    %v84 = vld [vmem:[%s83] sm:$0x1]
    %85 = vrot.lane.b32.xlu0 %v84, 16
    %v86 = vpop.permute.xlu0 %85
    %vm87 = vcmask 195712
    %88 = vst.msk [vmem:[#allocation0] sm:$0x1] %vm87, %v86
    %s89 = scalar_lea.vmem %s0, 1
    %v90 = vld [vmem:[%s89] sm:$0x1]
    %91 = vrot.lane.b32.xlu0 %v90, 8
    %v92 = vpop.permute.xlu0 %91
    %vm93 = vcmask 130112
    %94 = vst.msk [vmem:[#allocation0] sm:$0x1] %vm93, %v92
    %s96 = sshll.u32 1, 1
    %s97 = ssub.s32 %s96, 1
    %v99 = vld [vmem:[#allocation0] sm:%s97]
    %s100 = sshll.u32 1, 1
    %s101 = ssub.s32 %s100, 1
    %102 = vst [vmem:[%s1] sm:%s101] %v99

// kernel: tile.48
$region0: #{tile.48}
  #allocation0 [shape = 's32[1]{0}', space=sflag, size = 0x4, scoped, tag = 'scoped memory for tile.48']
  %s0 = inlined_call_operand.vmem [shape: f32[8], index: 0, kind: input, shape index: {}]
  %s1 = inlined_call_operand.vmem [shape: f32[8,8], index: 1, kind: output, shape index: {}]
  // Predicated region
  $region2: #{tile.48} parent=0 // pred_check
    _
  $region3: #{tile.48} parent=0 // pred_check_branch
    %3 = sbr.rel (0) target = $region5
  $region4: #{tile.48} parent=0 // pred_region
    _
  $region5: #{tile.48} parent=0 // pred_fallthru
    _
  %v4 = vld [vmem:[%s0] ss:$0 sm:$0xff]
  %5 = vst [vmem:[%s1] sm:$0xff] %v4

// kernel: tile.49
$region0: #{tile.49}
  %s0 = inlined_call_operand.vmem [shape: f32[8,8], index: 0, kind: input, shape index: {}]
  %s1 = inlined_call_operand.vmem [shape: f32[1,64], index: 1, kind: output, shape index: {}]
  $region1: #{tile.49} parent=0
    #allocation0 [shape = 'u8[4096]{0}', space=vmem, size = 0x1000, scoped, tag = 'scoped mem for output reshape']
    %v2 = vld [vmem:[%s0] sm:$0x1]
    %vm3 = vcmask 64512
    %4 = vst.msk [vmem:[#allocation0] sm:$0x1] %vm3, %v2
    %s5 = scalar_lea.vmem %s0, 7
    %v6 = vld [vmem:[%s5] sm:$0x1]
    %7 = vrot.lane.b32.xlu0 %v6, 56
    %v8 = vpop.permute.xlu0 %7
    %vm9 = vcmask 523712
    %10 = vst.msk [vmem:[#allocation0] sm:$0x1] %vm9, %v8
    %s11 = scalar_lea.vmem %s0, 6
    %v12 = vld [vmem:[%s11] sm:$0x1]
    %13 = vrot.lane.b32.xlu0 %v12, 48
    %v14 = vpop.permute.xlu0 %13
    %vm15 = vcmask 458112
    %16 = vst.msk [vmem:[#allocation0] sm:$0x1] %vm15, %v14
    %s17 = scalar_lea.vmem %s0, 5
    %v18 = vld [vmem:[%s17] sm:$0x1]
    %19 = vrot.lane.b32.xlu0 %v18, 40
    %v20 = vpop.permute.xlu0 %19
    %vm21 = vcmask 392512
    %22 = vst.msk [vmem:[#allocation0] sm:$0x1] %vm21, %v20
    %s23 = scalar_lea.vmem %s0, 4
    %v24 = vld [vmem:[%s23] sm:$0x1]
    %25 = vrot.lane.b32.xlu0 %v24, 32
    %v26 = vpop.permute.xlu0 %25
    %vm27 = vcmask 326912
    %28 = vst.msk [vmem:[#allocation0] sm:$0x1] %vm27, %v26
    %s29 = scalar_lea.vmem %s0, 3
    %v30 = vld [vmem:[%s29] sm:$0x1]
    %31 = vrot.lane.b32.xlu0 %v30, 24
    %v32 = vpop.permute.xlu0 %31
    %vm33 = vcmask 261312
    %34 = vst.msk [vmem:[#allocation0] sm:$0x1] %vm33, %v32
    %s35 = scalar_lea.vmem %s0, 2
    %v36 = vld [vmem:[%s35] sm:$0x1]
    %37 = vrot.lane.b32.xlu0 %v36, 16
    %v38 = vpop.permute.xlu0 %37
    %vm39 = vcmask 195712
    %40 = vst.msk [vmem:[#allocation0] sm:$0x1] %vm39, %v38
    %s41 = scalar_lea.vmem %s0, 1
    %v42 = vld [vmem:[%s41] sm:$0x1]
    %43 = vrot.lane.b32.xlu0 %v42, 8
    %v44 = vpop.permute.xlu0 %43
    %vm45 = vcmask 130112
    %46 = vst.msk [vmem:[#allocation0] sm:$0x1] %vm45, %v44
    %s48 = sshll.u32 1, 1
    %s49 = ssub.s32 %s48, 1
    %v51 = vld [vmem:[#allocation0] sm:%s49]
    %s52 = sshll.u32 1, 1
    %s53 = ssub.s32 %s52, 1
    %54 = vst [vmem:[%s1] sm:%s53] %v51

// kernel: residual_block_down.1
$region0: #{residual_block_down.1}
  #allocation0 [shape = 'u32[]', space=smem, size = 0x4, offset = 0x4, fixed_abs, tag = 'smem constant byte address 0x4 - core index']
  #allocation1 [shape = 'u32[144,128]{1,0:T(1,128)}', space=vmem, size = 0x12000, scoped, tag = 'internal scratch']
  #allocation2 [shape = 'f32[48,128]{1,0:T(8,128)}', space=vmem, size = 0x6000, scoped, tag = 'scratch operand']
  #allocation3 [shape = 'f32[48,128]{1,0:T(8,128)}', space=vmem, size = 0x6000, scoped, tag = 'scratch operand']
  %s0 = inlined_call_operand.vmem [shape: f32[32,128], index: 0, kind: input, shape index: {}]
  %s1 = inlined_call_operand.vmem [shape: f32[2,1,32], index: 1, kind: input, shape index: {}]
  %s2 = inlined_call_operand.vmem [shape: f32[128,128], index: 2, kind: input, shape index: {}]
  %s3 = inlined_call_operand.vmem [shape: f32[1,128], index: 3, kind: input, shape index: {}]
  %s4 = inlined_call_operand.vmem [shape: f32[32,128], index: 4, kind: input, shape index: {}]
  %s5 = inlined_call_operand.vmem [shape: f32[1,128], index: 5, kind: input, shape index: {}]
  %s6 = inlined_call_operand.vmem [shape: f32[384,128], index: 6, kind: input, shape index: {}]
  %s7 = inlined_call_operand.vmem [shape: f32[384,128], index: 7, kind: input, shape index: {}]
  %s8 = inlined_call_operand.vmem [shape: f32[1,128], index: 8, kind: input, shape index: {}]
  %s9 = inlined_call_operand.vmem [shape: f32[768,64], index: 9, kind: input, shape index: {}]
  %s10 = inlined_call_operand.vmem [shape: f32[1,64], index: 10, kind: input, shape index: {}]
  %s11 = inlined_call_operand.vmem [shape: f32[8,128], index: 11, kind: output, shape index: {}]
  %s12 = sld [smem:[#allocation0]]
  $region54: #{residual_block_down.1} parent=0
    _
  %s14 = ssub.s32 1, %s12
  %s15 = scalar_select 0, %s14, %s12
  // Predicated region
  $region2: #{residual_block_down.1} parent=0 // pred_check
    _
  $region3: #{residual_block_down.1} parent=0 // pred_check_branch
    %17 = sbr.rel (0) target = $region5
  $region4: #{residual_block_down.1} parent=0 // pred_region
    _
  $region5: #{residual_block_down.1} parent=0 // pred_fallthru
    _
  // Predicated region
  $region6: #{residual_block_down.1} parent=0 // pred_check
    _
  $region7: #{residual_block_down.1} parent=0 // pred_check_branch
    %19 = sbr.rel (0) target = $region9
  $region8: #{residual_block_down.1} parent=0 // pred_region
    _
  $region9: #{residual_block_down.1} parent=0 // pred_fallthru
    _
  // Predicated region
  $region10: #{residual_block_down.1} parent=0 // pred_check
    _
  $region11: #{residual_block_down.1} parent=0 // pred_check_branch
    %21 = sbr.rel (0) target = $region13
  $region12: #{residual_block_down.1} parent=0 // pred_region
    _
  $region13: #{residual_block_down.1} parent=0 // pred_fallthru
    _
  // Predicated region
  $region14: #{residual_block_down.1} parent=0 // pred_check
    _
  $region15: #{residual_block_down.1} parent=0 // pred_check_branch
    %23 = sbr.rel (0) target = $region17
  $region16: #{residual_block_down.1} parent=0 // pred_region
    _
  $region17: #{residual_block_down.1} parent=0 // pred_fallthru
    _
  // Predicated region
  $region18: #{residual_block_down.1} parent=0 // pred_check
    _
  $region19: #{residual_block_down.1} parent=0 // pred_check_branch
    %25 = sbr.rel (0) target = $region21
  $region20: #{residual_block_down.1} parent=0 // pred_region
    _
  $region21: #{residual_block_down.1} parent=0 // pred_fallthru
    _
  // Predicated region
  $region22: #{residual_block_down.1} parent=0 // pred_check
    _
  $region23: #{residual_block_down.1} parent=0 // pred_check_branch
    %27 = sbr.rel (0) target = $region25
  $region24: #{residual_block_down.1} parent=0 // pred_region
    _
  $region25: #{residual_block_down.1} parent=0 // pred_fallthru
    _
  // Predicated region
  $region26: #{residual_block_down.1} parent=0 // pred_check
    _
  $region27: #{residual_block_down.1} parent=0 // pred_check_branch
    %29 = sbr.rel (0) target = $region29
  $region28: #{residual_block_down.1} parent=0 // pred_region
    _
  $region29: #{residual_block_down.1} parent=0 // pred_fallthru
    _
  // Predicated region
  $region30: #{residual_block_down.1} parent=0 // pred_check
    _
  $region31: #{residual_block_down.1} parent=0 // pred_check_branch
    %31 = sbr.rel (0) target = $region33
  $region32: #{residual_block_down.1} parent=0 // pred_region
    _
  $region33: #{residual_block_down.1} parent=0 // pred_fallthru
    _
  // Predicated region
  $region34: #{residual_block_down.1} parent=0 // pred_check
    _
  $region35: #{residual_block_down.1} parent=0 // pred_check_branch
    %33 = sbr.rel (0) target = $region37
  $region36: #{residual_block_down.1} parent=0 // pred_region
    _
  $region37: #{residual_block_down.1} parent=0 // pred_fallthru
    _
  // Predicated region
  $region38: #{residual_block_down.1} parent=0 // pred_check
    _
  $region39: #{residual_block_down.1} parent=0 // pred_check_branch
    %35 = sbr.rel (0) target = $region41
  $region40: #{residual_block_down.1} parent=0 // pred_region
    _
  $region41: #{residual_block_down.1} parent=0 // pred_fallthru
    _
  // Predicated region
  $region42: #{residual_block_down.1} parent=0 // pred_check
    _
  $region43: #{residual_block_down.1} parent=0 // pred_check_branch
    %37 = sbr.rel (0) target = $region45
  $region44: #{residual_block_down.1} parent=0 // pred_region
    _
  $region45: #{residual_block_down.1} parent=0 // pred_fallthru
    _
  %38 = vst [vmem:[#allocation2] sm:$0x1] 0.0
  %39 = vst [vmem:[#allocation2 + $0x11] sm:$0x1] 0.0
  %40 = vst [vmem:[#allocation3] sm:$0x1] 0.0
  %41 = vst [vmem:[#allocation3 + $0x11] sm:$0x1] 0.0
  %42 = vst [vmem:[#allocation2 + $0x18] sm:$0x1] 0.0
  %43 = vst [vmem:[#allocation2 + $0x29] sm:$0x1] 0.0
  %44 = vst [vmem:[#allocation3 + $0x18] sm:$0x1] 0.0
  %45 = vst [vmem:[#allocation3 + $0x29] sm:$0x1] 0.0
  %v46 = vld [vmem:[%s0] sm:$0xff]
  %v47 = vld [vmem:[%s0 + $0x8] sm:$0xff]
  %v48 = vld [vmem:[%s0 + $0x10] sm:$0xff]
  %v49 = vld [vmem:[%s0 + $0x18] sm:$0xff]
  %v50 = vld [vmem:[%s2] sm:$0xff]
  %v51 = vld [vmem:[%s2 + $0x8] sm:$0xff]
  %v52 = vld [vmem:[%s2 + $0x10] sm:$0xff]
  %v53 = vld [vmem:[%s2 + $0x18] sm:$0xff]
  %v54 = vld [vmem:[%s2 + $0x20] sm:$0xff]
  %v55 = vld [vmem:[%s2 + $0x28] sm:$0xff]
  %v56 = vld [vmem:[%s2 + $0x30] sm:$0xff]
  %v57 = vld [vmem:[%s2 + $0x38] sm:$0xff]
  %v58 = vld [vmem:[%s2 + $0x40] sm:$0xff]
  %v59 = vld [vmem:[%s2 + $0x48] sm:$0xff]
  %v60 = vld [vmem:[%s2 + $0x50] sm:$0xff]
  %v61 = vld [vmem:[%s2 + $0x58] sm:$0xff]
  %v62 = vld [vmem:[%s2 + $0x60] sm:$0xff]
  %v63 = vld [vmem:[%s2 + $0x68] sm:$0xff]
  %v64 = vld [vmem:[%s2 + $0x70] sm:$0xff]
  %v65 = vld [vmem:[%s2 + $0x78] sm:$0xff]
  %v66 = vld [vmem:[%s3] sm:$0x1]
  %v68 = vlaneseq
  %v69 = vshrl.u32 %v68, 7
  %v70 = vsub.s32 0, %v69
  %v71 = vrot.slane %v66, %v70
  %73 = vmatprep.subr.mxu0 0.0
  %74 = vmatpush1.msra.mxu0 %v65
  %75 = vmatprep.subr.mxu0 0.0
  %76 = vmatpush1.msra.mxu0 %v64
  %77 = vmatprep.subr.mxu0 0.0
  %78 = vmatpush1.msra.mxu0 %v63
  %79 = vmatprep.subr.mxu0 0.0
  %80 = vmatpush1.msra.mxu0 %v62
  %81 = vmatprep.subr.mxu0 0.0
  %82 = vmatpush1.msra.mxu0 %v61
  %83 = vmatprep.subr.mxu0 0.0
  %84 = vmatpush1.msra.mxu0 %v60
  %85 = vmatprep.subr.mxu0 0.0
  %86 = vmatpush1.msra.mxu0 %v59
  %87 = vmatprep.subr.mxu0 0.0
  %88 = vmatpush1.msra.mxu0 %v58
  %89 = vmatprep.subr.mxu0 0.0
  %90 = vmatpush1.msra.mxu0 %v57
  %91 = vmatprep.subr.mxu0 0.0
  %92 = vmatpush1.msra.mxu0 %v56
  %93 = vmatprep.subr.mxu0 0.0
  %94 = vmatpush1.msra.mxu0 %v55
  %95 = vmatprep.subr.mxu0 0.0
  %96 = vmatpush1.msra.mxu0 %v54
  %97 = vmatprep.subr.mxu0 0.0
  %98 = vmatpush1.msra.mxu0 %v53
  %99 = vmatprep.subr.mxu0 0.0
  %100 = vmatpush1.msra.mxu0 %v52
  %101 = vmatprep.subr.mxu0 0.0
  %102 = vmatpush1.msra.mxu0 %v51
  %103 = vmatprep.subr.mxu0 0.0
  %104 = vmatpush1.msra.mxu0 %v50
  %105 = vmatprep.subr.mxu0 0.0
  %106 = vmatpush2.msra.mxu0 0.0
  %107 = vmatprep.subr.mxu0 0.0
  %108 = vmatpush2.msra.mxu0 0.0
  %109 = vmatprep.subr.mxu0 0.0
  %110 = vmatpush2.msra.mxu0 0.0
  %111 = vmatprep.subr.mxu0 0.0
  %112 = vmatpush2.msra.mxu0 0.0
  %113 = vmatprep.subr.mxu0 0.0
  %114 = vmatpush2.msra.mxu0 0.0
  %115 = vmatprep.subr.mxu0 0.0
  %116 = vmatpush2.msra.mxu0 0.0
  %117 = vmatprep.subr.mxu0 0.0
  %118 = vmatpush2.msra.mxu0 0.0
  %119 = vmatprep.subr.mxu0 0.0
  %120 = vmatpush2.msra.mxu0 0.0
  %121 = vmatprep.subr.mxu0 0.0
  %122 = vmatpush2.msra.mxu0 0.0
  %123 = vmatprep.subr.mxu0 0.0
  %124 = vmatpush2.msra.mxu0 0.0
  %125 = vmatprep.subr.mxu0 0.0
  %126 = vmatpush2.msra.mxu0 0.0
  %127 = vmatprep.subr.mxu0 0.0
  %128 = vmatpush2.msra.mxu0 0.0
  %129 = vmatprep.subr.mxu0 0.0
  %130 = vmatpush2.msra.mxu0 0.0
  %131 = vmatprep.subr.mxu0 0.0
  %132 = vmatpush2.msra.mxu0 0.0
  %133 = vmatprep.subr.mxu0 0.0
  %134 = vmatpush2.msra.mxu0 0.0
  %135 = vmatprep.subr.mxu0 0.0
  %136 = vmatpush2.msra.mxu0 0.0
  %137 = vmatprep.mubr.f32.mxu0 0.0
  %138 = vmatmul.mubr.f32.gmra.mxu0 %v46
  %v139 = vpop.f32.mrf.mxu0
  %v140 = vadd.f32 %v71, %v139
  %v141 = vpop.f32.mrf.mxu0
  %142 = vmatprep.mubr.f32.mxu0 0.0
  %143 = vmatmul.mubr.f32.gmra.mxu0 %v47
  %v144 = vpop.f32.mrf.mxu0
  %v145 = vadd.f32 %v71, %v144
  %v146 = vpop.f32.mrf.mxu0
  %147 = vmatprep.mubr.f32.mxu0 0.0
  %148 = vmatmul.mubr.f32.gmra.mxu0 %v48
  %v149 = vpop.f32.mrf.mxu0
  %v150 = vadd.f32 %v71, %v149
  %v151 = vpop.f32.mrf.mxu0
  %152 = vmatprep.mubr.f32.mxu0 0.0
  %153 = vmatmul.mubr.f32.gmra.mxu0 %v49
  %v154 = vpop.f32.mrf.mxu0
  %v155 = vadd.f32 %v71, %v154
  %v156 = vpop.f32.mrf.mxu0
  %157 = vdwg.mxu0
  %158 = vst [vmem:[#allocation2 + $0x1] sm:$0xff] %v140
  %159 = vst [vmem:[#allocation2 + $0x9] sm:$0xff] %v145
  %160 = vst [vmem:[#allocation2 + $0x19] sm:$0xff] %v150
  %161 = vst [vmem:[#allocation2 + $0x21] sm:$0xff] %v155
  %v162 = vxor.u32 %v46, 2147483648
  %v163 = vxor.u32 %v47, 2147483648
  %v164 = vxor.u32 %v48, 2147483648
  %v165 = vxor.u32 %v49, 2147483648
  %v166 = vmul.f32 %v162, 1.442695
  %v167 = vpow.pop %v166
  %v168 = vmul.f32 %v163, 1.442695
  %v169 = vpow.pop %v168
  %v170 = vmul.f32 %v164, 1.442695
  %v171 = vpow.pop %v170
  %v172 = vmul.f32 %v165, 1.442695
  %v173 = vpow.pop %v172
  %v174 = vadd.f32 %v167, 1.0
  %v175 = vadd.f32 %v169, 1.0
  %v176 = vadd.f32 %v171, 1.0
  %v177 = vadd.f32 %v173, 1.0
  %v178 = vrcp.pop %v174
  %v179 = vmul.f32 1.0, %v178
  %v180 = vrcp.pop %v175
  %v181 = vmul.f32 1.0, %v180
  %v182 = vrcp.pop %v176
  %v183 = vmul.f32 1.0, %v182
  %v184 = vrcp.pop %v177
  %v185 = vmul.f32 1.0, %v184
  %v186 = vmul.f32 %v46, %v179
  %v187 = vmul.f32 %v47, %v181
  %v188 = vmul.f32 %v48, %v183
  %v189 = vmul.f32 %v49, %v185
  %190 = vst [vmem:[#allocation3 + $0x1] sm:$0xff] %v186
  %191 = vst [vmem:[#allocation3 + $0x9] sm:$0xff] %v187
  %192 = vst [vmem:[#allocation3 + $0x19] sm:$0xff] %v188
  %193 = vst [vmem:[#allocation3 + $0x21] sm:$0xff] %v189
  %v194 = vld [vmem:[#allocation3] sm:$0xff]
  %v195 = vld [vmem:[#allocation3 + $0x8] sm:$0xff]
  %v196 = vld [vmem:[#allocation3 + $0x1] sm:$0xff]
  %v197 = vld [vmem:[#allocation3 + $0x9] sm:$0xff]
  %v198 = vld [vmem:[#allocation3 + $0x2] sm:$0xff]
  %v199 = vld [vmem:[#allocation3 + $0xa] sm:$0xff]
  %v200 = vld [vmem:[#allocation3 + $0x18] sm:$0xff]
  %v201 = vld [vmem:[#allocation3 + $0x20] sm:$0xff]
  %v202 = vld [vmem:[#allocation3 + $0x19] sm:$0xff]
  %v203 = vld [vmem:[#allocation3 + $0x21] sm:$0xff]
  %v204 = vld [vmem:[#allocation3 + $0x1a] sm:$0xff]
  %v205 = vld [vmem:[#allocation3 + $0x22] sm:$0xff]
  %v206 = vld [vmem:[%s6] sm:$0xff]
  %v207 = vld [vmem:[%s6 + $0x8] sm:$0xff]
  %v208 = vld [vmem:[%s6 + $0x10] sm:$0xff]
  %v209 = vld [vmem:[%s6 + $0x18] sm:$0xff]
  %v210 = vld [vmem:[%s6 + $0x20] sm:$0xff]
  %v211 = vld [vmem:[%s6 + $0x28] sm:$0xff]
  %v212 = vld [vmem:[%s6 + $0x30] sm:$0xff]
  %v213 = vld [vmem:[%s6 + $0x38] sm:$0xff]
  %v214 = vld [vmem:[%s6 + $0x40] sm:$0xff]
  %v215 = vld [vmem:[%s6 + $0x48] sm:$0xff]
  %v216 = vld [vmem:[%s6 + $0x50] sm:$0xff]
  %v217 = vld [vmem:[%s6 + $0x58] sm:$0xff]
  %v218 = vld [vmem:[%s6 + $0x60] sm:$0xff]
  %v219 = vld [vmem:[%s6 + $0x68] sm:$0xff]
  %v220 = vld [vmem:[%s6 + $0x70] sm:$0xff]
  %v221 = vld [vmem:[%s6 + $0x78] sm:$0xff]
  %v222 = vld [vmem:[%s6 + $0x80] sm:$0xff]
  %v223 = vld [vmem:[%s6 + $0x88] sm:$0xff]
  %v224 = vld [vmem:[%s6 + $0x90] sm:$0xff]
  %v225 = vld [vmem:[%s6 + $0x98] sm:$0xff]
  %v226 = vld [vmem:[%s6 + $0xa0] sm:$0xff]
  %v227 = vld [vmem:[%s6 + $0xa8] sm:$0xff]
  %v228 = vld [vmem:[%s6 + $0xb0] sm:$0xff]
  %v229 = vld [vmem:[%s6 + $0xb8] sm:$0xff]
  %v230 = vld [vmem:[%s6 + $0xc0] sm:$0xff]
  %v231 = vld [vmem:[%s6 + $0xc8] sm:$0xff]
  %v232 = vld [vmem:[%s6 + $0xd0] sm:$0xff]
  %v233 = vld [vmem:[%s6 + $0xd8] sm:$0xff]
  %v234 = vld [vmem:[%s6 + $0xe0] sm:$0xff]
  %v235 = vld [vmem:[%s6 + $0xe8] sm:$0xff]
  %v236 = vld [vmem:[%s6 + $0xf0] sm:$0xff]
  %v237 = vld [vmem:[%s6 + $0xf8] sm:$0xff]
  %v238 = vld [vmem:[%s6 + $0x100] sm:$0xff]
  %v239 = vld [vmem:[%s6 + $0x108] sm:$0xff]
  %v240 = vld [vmem:[%s6 + $0x110] sm:$0xff]
  %v241 = vld [vmem:[%s6 + $0x118] sm:$0xff]
  %v242 = vld [vmem:[%s6 + $0x120] sm:$0xff]
  %v243 = vld [vmem:[%s6 + $0x128] sm:$0xff]
  %v244 = vld [vmem:[%s6 + $0x130] sm:$0xff]
  %v245 = vld [vmem:[%s6 + $0x138] sm:$0xff]
  %v246 = vld [vmem:[%s6 + $0x140] sm:$0xff]
  %v247 = vld [vmem:[%s6 + $0x148] sm:$0xff]
  %v248 = vld [vmem:[%s6 + $0x150] sm:$0xff]
  %v249 = vld [vmem:[%s6 + $0x158] sm:$0xff]
  %v250 = vld [vmem:[%s6 + $0x160] sm:$0xff]
  %v251 = vld [vmem:[%s6 + $0x168] sm:$0xff]
  %v252 = vld [vmem:[%s6 + $0x170] sm:$0xff]
  %v253 = vld [vmem:[%s6 + $0x178] sm:$0xff]
  %254 = vmatprep.subr.mxu0 0.0
  %255 = vmatpush1.msra.mxu0 %v221
  %256 = vmatprep.subr.mxu0 0.0
  %257 = vmatpush1.msra.mxu0 %v220
  %258 = vmatprep.subr.mxu0 0.0
  %259 = vmatpush1.msra.mxu0 %v219
  %260 = vmatprep.subr.mxu0 0.0
  %261 = vmatpush1.msra.mxu0 %v218
  %262 = vmatprep.subr.mxu0 0.0
  %263 = vmatpush1.msra.mxu0 %v217
  %264 = vmatprep.subr.mxu0 0.0
  %265 = vmatpush1.msra.mxu0 %v216
  %266 = vmatprep.subr.mxu0 0.0
  %267 = vmatpush1.msra.mxu0 %v215
  %268 = vmatprep.subr.mxu0 0.0
  %269 = vmatpush1.msra.mxu0 %v214
  %270 = vmatprep.subr.mxu0 0.0
  %271 = vmatpush1.msra.mxu0 %v213
  %272 = vmatprep.subr.mxu0 0.0
  %273 = vmatpush1.msra.mxu0 %v212
  %274 = vmatprep.subr.mxu0 0.0
  %275 = vmatpush1.msra.mxu0 %v211
  %276 = vmatprep.subr.mxu0 0.0
  %277 = vmatpush1.msra.mxu0 %v210
  %278 = vmatprep.subr.mxu0 0.0
  %279 = vmatpush1.msra.mxu0 %v209
  %280 = vmatprep.subr.mxu0 0.0
  %281 = vmatpush1.msra.mxu0 %v208
  %282 = vmatprep.subr.mxu0 0.0
  %283 = vmatpush1.msra.mxu0 %v207
  %284 = vmatprep.subr.mxu0 0.0
  %285 = vmatpush1.msra.mxu0 %v206
  %286 = vmatprep.subr.mxu0 0.0
  %287 = vmatpush2.msra.mxu0 %v237
  %288 = vmatprep.subr.mxu0 0.0
  %289 = vmatpush2.msra.mxu0 %v236
  %290 = vmatprep.subr.mxu0 0.0
  %291 = vmatpush2.msra.mxu0 %v235
  %292 = vmatprep.subr.mxu0 0.0
  %293 = vmatpush2.msra.mxu0 %v234
  %294 = vmatprep.subr.mxu0 0.0
  %295 = vmatpush2.msra.mxu0 %v233
  %296 = vmatprep.subr.mxu0 0.0
  %297 = vmatpush2.msra.mxu0 %v232
  %298 = vmatprep.subr.mxu0 0.0
  %299 = vmatpush2.msra.mxu0 %v231
  %300 = vmatprep.subr.mxu0 0.0
  %301 = vmatpush2.msra.mxu0 %v230
  %302 = vmatprep.subr.mxu0 0.0
  %303 = vmatpush2.msra.mxu0 %v229
  %304 = vmatprep.subr.mxu0 0.0
  %305 = vmatpush2.msra.mxu0 %v228
  %306 = vmatprep.subr.mxu0 0.0
  %307 = vmatpush2.msra.mxu0 %v227
  %308 = vmatprep.subr.mxu0 0.0
  %309 = vmatpush2.msra.mxu0 %v226
  %310 = vmatprep.subr.mxu0 0.0
  %311 = vmatpush2.msra.mxu0 %v225
  %312 = vmatprep.subr.mxu0 0.0
  %313 = vmatpush2.msra.mxu0 %v224
  %314 = vmatprep.subr.mxu0 0.0
  %315 = vmatpush2.msra.mxu0 %v223
  %316 = vmatprep.subr.mxu0 0.0
  %317 = vmatpush2.msra.mxu0 %v222
  %318 = vmatprep.mubr.f32.mxu0 %v196
  %319 = vmatmul.mubr.f32.gmra.mxu0 %v194
  %v320 = vpop.f32.mrf.mxu0
  %v321 = vadd.f32 0.0, %v320
  %v322 = vpop.f32.mrf.mxu0
  %323 = vmatprep.mubr.f32.mxu0 %v197
  %324 = vmatmul.mubr.f32.gmra.mxu0 %v195
  %v325 = vpop.f32.mrf.mxu0
  %v326 = vadd.f32 0.0, %v325
  %v327 = vpop.f32.mrf.mxu0
  %328 = vmatprep.mubr.f32.mxu0 %v202
  %329 = vmatmul.mubr.f32.gmra.mxu0 %v200
  %v330 = vpop.f32.mrf.mxu0
  %v331 = vadd.f32 0.0, %v330
  %v332 = vpop.f32.mrf.mxu0
  %333 = vmatprep.mubr.f32.mxu0 %v203
  %334 = vmatmul.mubr.f32.gmra.mxu0 %v201
  %v335 = vpop.f32.mrf.mxu0
  %v336 = vadd.f32 0.0, %v335
  %v337 = vpop.f32.mrf.mxu0
  %338 = vdwg.mxu0
  %339 = vmatprep.subr.mxu0 0.0
  %340 = vmatpush1.msra.mxu0 %v253
  %341 = vmatprep.subr.mxu0 0.0
  %342 = vmatpush1.msra.mxu0 %v252
  %343 = vmatprep.subr.mxu0 0.0
  %344 = vmatpush1.msra.mxu0 %v251
  %345 = vmatprep.subr.mxu0 0.0
  %346 = vmatpush1.msra.mxu0 %v250
  %347 = vmatprep.subr.mxu0 0.0
  %348 = vmatpush1.msra.mxu0 %v249
  %349 = vmatprep.subr.mxu0 0.0
  %350 = vmatpush1.msra.mxu0 %v248
  %351 = vmatprep.subr.mxu0 0.0
  %352 = vmatpush1.msra.mxu0 %v247
  %353 = vmatprep.subr.mxu0 0.0
  %354 = vmatpush1.msra.mxu0 %v246
  %355 = vmatprep.subr.mxu0 0.0
  %356 = vmatpush1.msra.mxu0 %v245
  %357 = vmatprep.subr.mxu0 0.0
  %358 = vmatpush1.msra.mxu0 %v244
  %359 = vmatprep.subr.mxu0 0.0
  %360 = vmatpush1.msra.mxu0 %v243
  %361 = vmatprep.subr.mxu0 0.0
  %362 = vmatpush1.msra.mxu0 %v242
  %363 = vmatprep.subr.mxu0 0.0
  %364 = vmatpush1.msra.mxu0 %v241
  %365 = vmatprep.subr.mxu0 0.0
  %366 = vmatpush1.msra.mxu0 %v240
  %367 = vmatprep.subr.mxu0 0.0
  %368 = vmatpush1.msra.mxu0 %v239
  %369 = vmatprep.subr.mxu0 0.0
  %370 = vmatpush1.msra.mxu0 %v238
  %371 = vmatprep.subr.mxu0 0.0
  %372 = vmatpush2.msra.mxu0 0.0
  %373 = vmatprep.subr.mxu0 0.0
  %374 = vmatpush2.msra.mxu0 0.0
  %375 = vmatprep.subr.mxu0 0.0
  %376 = vmatpush2.msra.mxu0 0.0
  %377 = vmatprep.subr.mxu0 0.0
  %378 = vmatpush2.msra.mxu0 0.0
  %379 = vmatprep.subr.mxu0 0.0
  %380 = vmatpush2.msra.mxu0 0.0
  %381 = vmatprep.subr.mxu0 0.0
  %382 = vmatpush2.msra.mxu0 0.0
  %383 = vmatprep.subr.mxu0 0.0
  %384 = vmatpush2.msra.mxu0 0.0
  %385 = vmatprep.subr.mxu0 0.0
  %386 = vmatpush2.msra.mxu0 0.0
  %387 = vmatprep.subr.mxu0 0.0
  %388 = vmatpush2.msra.mxu0 0.0
  %389 = vmatprep.subr.mxu0 0.0
  %390 = vmatpush2.msra.mxu0 0.0
  %391 = vmatprep.subr.mxu0 0.0
  %392 = vmatpush2.msra.mxu0 0.0
  %393 = vmatprep.subr.mxu0 0.0
  %394 = vmatpush2.msra.mxu0 0.0
  %395 = vmatprep.subr.mxu0 0.0
  %396 = vmatpush2.msra.mxu0 0.0
  %397 = vmatprep.subr.mxu0 0.0
  %398 = vmatpush2.msra.mxu0 0.0
  %399 = vmatprep.subr.mxu0 0.0
  %400 = vmatpush2.msra.mxu0 0.0
  %401 = vmatprep.subr.mxu0 0.0
  %402 = vmatpush2.msra.mxu0 0.0
  %403 = vmatprep.mubr.f32.mxu0 0.0
  %404 = vmatmul.mubr.f32.gmra.mxu0 %v198
  %v405 = vpop.f32.mrf.mxu0
  %v406 = vadd.f32 %v321, %v405
  %v407 = vpop.f32.mrf.mxu0
  %408 = vmatprep.mubr.f32.mxu0 0.0
  %409 = vmatmul.mubr.f32.gmra.mxu0 %v199
  %v410 = vpop.f32.mrf.mxu0
  %v411 = vadd.f32 %v326, %v410
  %v412 = vpop.f32.mrf.mxu0
  %413 = vmatprep.mubr.f32.mxu0 0.0
  %414 = vmatmul.mubr.f32.gmra.mxu0 %v204
  %v415 = vpop.f32.mrf.mxu0
  %v416 = vadd.f32 %v331, %v415
  %v417 = vpop.f32.mrf.mxu0
  %418 = vmatprep.mubr.f32.mxu0 0.0
  %419 = vmatmul.mubr.f32.gmra.mxu0 %v205
  %v420 = vpop.f32.mrf.mxu0
  %v421 = vadd.f32 %v336, %v420
  %v422 = vpop.f32.mrf.mxu0
  %423 = vdwg.mxu0
  %v424 = vld [vmem:[%s1] sm:$0x1]
  %v425 = vxor.u32 %v424, 2147483648
  %v426 = vmul.f32 %v425, 1.442695
  %v427 = vpow.pop %v426
  %v428 = vadd.f32 %v427, 1.0
  %v429 = vrcp.pop %v428
  %v430 = vmul.f32 1.0, %v429
  %v431 = vmul.f32 %v424, %v430
  %v432 = vld [vmem:[%s4] sm:$0xff]
  %v433 = vld [vmem:[%s4 + $0x8] sm:$0xff]
  %v434 = vld [vmem:[%s4 + $0x10] sm:$0xff]
  %v435 = vld [vmem:[%s4 + $0x18] sm:$0xff]
  %v436 = vld [vmem:[%s5] sm:$0x1]
  %vm437 = vcmask 261120
  %v439 = vsel %vm437, %v431, 0
  %441 = vmatprep.subr.mxu0 0.0
  %442 = vmatpush1.msra.mxu0 0.0
  %443 = vmatprep.subr.mxu0 0.0
  %444 = vmatpush1.msra.mxu0 0.0
  %445 = vmatprep.subr.mxu0 0.0
  %446 = vmatpush1.msra.mxu0 0.0
  %447 = vmatprep.subr.mxu0 0.0
  %448 = vmatpush1.msra.mxu0 0.0
  %449 = vmatprep.subr.mxu0 0.0
  %450 = vmatpush1.msra.mxu0 0.0
  %451 = vmatprep.subr.mxu0 0.0
  %452 = vmatpush1.msra.mxu0 0.0
  %453 = vmatprep.subr.mxu0 0.0
  %454 = vmatpush1.msra.mxu0 0.0
  %455 = vmatprep.subr.mxu0 0.0
  %456 = vmatpush1.msra.mxu0 0.0
  %457 = vmatprep.subr.mxu0 0.0
  %458 = vmatpush1.msra.mxu0 0.0
  %459 = vmatprep.subr.mxu0 0.0
  %460 = vmatpush1.msra.mxu0 0.0
  %461 = vmatprep.subr.mxu0 0.0
  %462 = vmatpush1.msra.mxu0 0.0
  %463 = vmatprep.subr.mxu0 0.0
  %464 = vmatpush1.msra.mxu0 0.0
  %465 = vmatprep.subr.mxu0 0.0
  %466 = vmatpush1.msra.mxu0 %v435
  %467 = vmatprep.subr.mxu0 0.0
  %468 = vmatpush1.msra.mxu0 %v434
  %469 = vmatprep.subr.mxu0 0.0
  %470 = vmatpush1.msra.mxu0 %v433
  %471 = vmatprep.subr.mxu0 0.0
  %472 = vmatpush1.msra.mxu0 %v432
  %473 = vmatprep.subr.mxu0 0.0
  %474 = vmatpush2.msra.mxu0 0.0
  %475 = vmatprep.subr.mxu0 0.0
  %476 = vmatpush2.msra.mxu0 0.0
  %477 = vmatprep.subr.mxu0 0.0
  %478 = vmatpush2.msra.mxu0 0.0
  %479 = vmatprep.subr.mxu0 0.0
  %480 = vmatpush2.msra.mxu0 0.0
  %481 = vmatprep.subr.mxu0 0.0
  %482 = vmatpush2.msra.mxu0 0.0
  %483 = vmatprep.subr.mxu0 0.0
  %484 = vmatpush2.msra.mxu0 0.0
  %485 = vmatprep.subr.mxu0 0.0
  %486 = vmatpush2.msra.mxu0 0.0
  %487 = vmatprep.subr.mxu0 0.0
  %488 = vmatpush2.msra.mxu0 0.0
  %489 = vmatprep.subr.mxu0 0.0
  %490 = vmatpush2.msra.mxu0 0.0
  %491 = vmatprep.subr.mxu0 0.0
  %492 = vmatpush2.msra.mxu0 0.0
  %493 = vmatprep.subr.mxu0 0.0
  %494 = vmatpush2.msra.mxu0 0.0
  %495 = vmatprep.subr.mxu0 0.0
  %496 = vmatpush2.msra.mxu0 0.0
  %497 = vmatprep.subr.mxu0 0.0
  %498 = vmatpush2.msra.mxu0 0.0
  %499 = vmatprep.subr.mxu0 0.0
  %500 = vmatpush2.msra.mxu0 0.0
  %501 = vmatprep.subr.mxu0 0.0
  %502 = vmatpush2.msra.mxu0 0.0
  %503 = vmatprep.subr.mxu0 0.0
  %504 = vmatpush2.msra.mxu0 0.0
  %505 = vmatprep.mubr.f32.mxu0 0.0
  %506 = vmatmul.mubr.f32.gmra.mxu0 %v439
  %v507 = vpop.f32.mrf.mxu0
  %v508 = vadd.f32 %v436, %v507
  %v509 = vpop.f32.mrf.mxu0
  %510 = vdwg.mxu0
  %v511 = vlaneseq
  %v512 = vshrl.u32 %v511, 7
  %v513 = vsub.s32 0, %v512
  %v514 = vrot.slane %v508, %v513
  %v515 = vadd.f32 %v406, %v514
  %v516 = vadd.f32 %v411, %v514
  %v517 = vxor.u32 %v515, 2147483648
  %v518 = vxor.u32 %v516, 2147483648
  %v519 = vmul.f32 %v517, 1.442695
  %v520 = vpow.pop %v519
  %v521 = vmul.f32 %v518, 1.442695
  %v522 = vpow.pop %v521
  %v523 = vadd.f32 %v520, 1.0
  %v524 = vadd.f32 %v522, 1.0
  %v525 = vrcp.pop %v523
  %v526 = vmul.f32 1.0, %v525
  %v527 = vrcp.pop %v524
  %v528 = vmul.f32 1.0, %v527
  %v529 = vmul.f32 %v515, %v526
  %v530 = vmul.f32 %v516, %v528
  %531 = vst [vmem:[#allocation3 + $0x1] sm:$0xff] %v529
  %532 = vst [vmem:[#allocation3 + $0x9] sm:$0xff] %v530
  %s533 = scalar_lea.vmem %s1, 1
  %v534 = vld [vmem:[%s533] sm:$0x1]
  %v535 = vxor.u32 %v534, 2147483648
  %v536 = vmul.f32 %v535, 1.442695
  %v537 = vpow.pop %v536
  %v538 = vadd.f32 %v537, 1.0
  %v539 = vrcp.pop %v538
  %v540 = vmul.f32 1.0, %v539
  %v541 = vmul.f32 %v534, %v540
  %v542 = vld [vmem:[%s4] sm:$0xff]
  %v543 = vld [vmem:[%s4 + $0x8] sm:$0xff]
  %v544 = vld [vmem:[%s4 + $0x10] sm:$0xff]
  %v545 = vld [vmem:[%s4 + $0x18] sm:$0xff]
  %v546 = vld [vmem:[%s5] sm:$0x1]
  %v548 = vsel %vm437, %v541, 0
  %550 = vmatprep.subr.mxu0 0.0
  %551 = vmatpush1.msra.mxu0 0.0
  %552 = vmatprep.subr.mxu0 0.0
  %553 = vmatpush1.msra.mxu0 0.0
  %554 = vmatprep.subr.mxu0 0.0
  %555 = vmatpush1.msra.mxu0 0.0
  %556 = vmatprep.subr.mxu0 0.0
  %557 = vmatpush1.msra.mxu0 0.0
  %558 = vmatprep.subr.mxu0 0.0
  %559 = vmatpush1.msra.mxu0 0.0
  %560 = vmatprep.subr.mxu0 0.0
  %561 = vmatpush1.msra.mxu0 0.0
  %562 = vmatprep.subr.mxu0 0.0
  %563 = vmatpush1.msra.mxu0 0.0
  %564 = vmatprep.subr.mxu0 0.0
  %565 = vmatpush1.msra.mxu0 0.0
  %566 = vmatprep.subr.mxu0 0.0
  %567 = vmatpush1.msra.mxu0 0.0
  %568 = vmatprep.subr.mxu0 0.0
  %569 = vmatpush1.msra.mxu0 0.0
  %570 = vmatprep.subr.mxu0 0.0
  %571 = vmatpush1.msra.mxu0 0.0
  %572 = vmatprep.subr.mxu0 0.0
  %573 = vmatpush1.msra.mxu0 0.0
  %574 = vmatprep.subr.mxu0 0.0
  %575 = vmatpush1.msra.mxu0 %v545
  %576 = vmatprep.subr.mxu0 0.0
  %577 = vmatpush1.msra.mxu0 %v544
  %578 = vmatprep.subr.mxu0 0.0
  %579 = vmatpush1.msra.mxu0 %v543
  %580 = vmatprep.subr.mxu0 0.0
  %581 = vmatpush1.msra.mxu0 %v542
  %582 = vmatprep.subr.mxu0 0.0
  %583 = vmatpush2.msra.mxu0 0.0
  %584 = vmatprep.subr.mxu0 0.0
  %585 = vmatpush2.msra.mxu0 0.0
  %586 = vmatprep.subr.mxu0 0.0
  %587 = vmatpush2.msra.mxu0 0.0
  %588 = vmatprep.subr.mxu0 0.0
  %589 = vmatpush2.msra.mxu0 0.0
  %590 = vmatprep.subr.mxu0 0.0
  %591 = vmatpush2.msra.mxu0 0.0
  %592 = vmatprep.subr.mxu0 0.0
  %593 = vmatpush2.msra.mxu0 0.0
  %594 = vmatprep.subr.mxu0 0.0
  %595 = vmatpush2.msra.mxu0 0.0
  %596 = vmatprep.subr.mxu0 0.0
  %597 = vmatpush2.msra.mxu0 0.0
  %598 = vmatprep.subr.mxu0 0.0
  %599 = vmatpush2.msra.mxu0 0.0
  %600 = vmatprep.subr.mxu0 0.0
  %601 = vmatpush2.msra.mxu0 0.0
  %602 = vmatprep.subr.mxu0 0.0
  %603 = vmatpush2.msra.mxu0 0.0
  %604 = vmatprep.subr.mxu0 0.0
  %605 = vmatpush2.msra.mxu0 0.0
  %606 = vmatprep.subr.mxu0 0.0
  %607 = vmatpush2.msra.mxu0 0.0
  %608 = vmatprep.subr.mxu0 0.0
  %609 = vmatpush2.msra.mxu0 0.0
  %610 = vmatprep.subr.mxu0 0.0
  %611 = vmatpush2.msra.mxu0 0.0
  %612 = vmatprep.subr.mxu0 0.0
  %613 = vmatpush2.msra.mxu0 0.0
  %614 = vmatprep.mubr.f32.mxu0 0.0
  %615 = vmatmul.mubr.f32.gmra.mxu0 %v548
  %v616 = vpop.f32.mrf.mxu0
  %v617 = vadd.f32 %v546, %v616
  %v618 = vpop.f32.mrf.mxu0
  %619 = vdwg.mxu0
  %v620 = vlaneseq
  %v621 = vshrl.u32 %v620, 7
  %v622 = vsub.s32 0, %v621
  %v623 = vrot.slane %v617, %v622
  %v624 = vadd.f32 %v416, %v623
  %v625 = vadd.f32 %v421, %v623
  %v626 = vxor.u32 %v624, 2147483648
  %v627 = vxor.u32 %v625, 2147483648
  %v628 = vmul.f32 %v626, 1.442695
  %v629 = vpow.pop %v628
  %v630 = vmul.f32 %v627, 1.442695
  %v631 = vpow.pop %v630
  %v632 = vadd.f32 %v629, 1.0
  %v633 = vadd.f32 %v631, 1.0
  %v634 = vrcp.pop %v632
  %v635 = vmul.f32 1.0, %v634
  %v636 = vrcp.pop %v633
  %v637 = vmul.f32 1.0, %v636
  %v638 = vmul.f32 %v624, %v635
  %v639 = vmul.f32 %v625, %v637
  %640 = vst [vmem:[#allocation3 + $0x19] sm:$0xff] %v638
  %641 = vst [vmem:[#allocation3 + $0x21] sm:$0xff] %v639
  %v642 = vld [vmem:[#allocation3] sm:$0xff]
  %v643 = vld [vmem:[#allocation3 + $0x8] sm:$0xff]
  %v644 = vld [vmem:[#allocation3 + $0x1] sm:$0xff]
  %v645 = vld [vmem:[#allocation3 + $0x9] sm:$0xff]
  %v646 = vld [vmem:[#allocation3 + $0x2] sm:$0xff]
  %v647 = vld [vmem:[#allocation3 + $0xa] sm:$0xff]
  %v648 = vld [vmem:[#allocation3 + $0x18] sm:$0xff]
  %v649 = vld [vmem:[#allocation3 + $0x20] sm:$0xff]
  %v650 = vld [vmem:[#allocation3 + $0x19] sm:$0xff]
  %v651 = vld [vmem:[#allocation3 + $0x21] sm:$0xff]
  %v652 = vld [vmem:[#allocation3 + $0x1a] sm:$0xff]
  %v653 = vld [vmem:[#allocation3 + $0x22] sm:$0xff]
  %v654 = vld [vmem:[%s7] sm:$0xff]
  %v655 = vld [vmem:[%s7 + $0x8] sm:$0xff]
  %v656 = vld [vmem:[%s7 + $0x10] sm:$0xff]
  %v657 = vld [vmem:[%s7 + $0x18] sm:$0xff]
  %v658 = vld [vmem:[%s7 + $0x20] sm:$0xff]
  %v659 = vld [vmem:[%s7 + $0x28] sm:$0xff]
  %v660 = vld [vmem:[%s7 + $0x30] sm:$0xff]
  %v661 = vld [vmem:[%s7 + $0x38] sm:$0xff]
  %v662 = vld [vmem:[%s7 + $0x40] sm:$0xff]
  %v663 = vld [vmem:[%s7 + $0x48] sm:$0xff]
  %v664 = vld [vmem:[%s7 + $0x50] sm:$0xff]
  %v665 = vld [vmem:[%s7 + $0x58] sm:$0xff]
  %v666 = vld [vmem:[%s7 + $0x60] sm:$0xff]
  %v667 = vld [vmem:[%s7 + $0x68] sm:$0xff]
  %v668 = vld [vmem:[%s7 + $0x70] sm:$0xff]
  %v669 = vld [vmem:[%s7 + $0x78] sm:$0xff]
  %v670 = vld [vmem:[%s7 + $0x80] sm:$0xff]
  %v671 = vld [vmem:[%s7 + $0x88] sm:$0xff]
  %v672 = vld [vmem:[%s7 + $0x90] sm:$0xff]
  %v673 = vld [vmem:[%s7 + $0x98] sm:$0xff]
  %v674 = vld [vmem:[%s7 + $0xa0] sm:$0xff]
  %v675 = vld [vmem:[%s7 + $0xa8] sm:$0xff]
  %v676 = vld [vmem:[%s7 + $0xb0] sm:$0xff]
  %v677 = vld [vmem:[%s7 + $0xb8] sm:$0xff]
  %v678 = vld [vmem:[%s7 + $0xc0] sm:$0xff]
  %v679 = vld [vmem:[%s7 + $0xc8] sm:$0xff]
  %v680 = vld [vmem:[%s7 + $0xd0] sm:$0xff]
  %v681 = vld [vmem:[%s7 + $0xd8] sm:$0xff]
  %v682 = vld [vmem:[%s7 + $0xe0] sm:$0xff]
  %v683 = vld [vmem:[%s7 + $0xe8] sm:$0xff]
  %v684 = vld [vmem:[%s7 + $0xf0] sm:$0xff]
  %v685 = vld [vmem:[%s7 + $0xf8] sm:$0xff]
  %v686 = vld [vmem:[%s7 + $0x100] sm:$0xff]
  %v687 = vld [vmem:[%s7 + $0x108] sm:$0xff]
  %v688 = vld [vmem:[%s7 + $0x110] sm:$0xff]
  %v689 = vld [vmem:[%s7 + $0x118] sm:$0xff]
  %v690 = vld [vmem:[%s7 + $0x120] sm:$0xff]
  %v691 = vld [vmem:[%s7 + $0x128] sm:$0xff]
  %v692 = vld [vmem:[%s7 + $0x130] sm:$0xff]
  %v693 = vld [vmem:[%s7 + $0x138] sm:$0xff]
  %v694 = vld [vmem:[%s7 + $0x140] sm:$0xff]
  %v695 = vld [vmem:[%s7 + $0x148] sm:$0xff]
  %v696 = vld [vmem:[%s7 + $0x150] sm:$0xff]
  %v697 = vld [vmem:[%s7 + $0x158] sm:$0xff]
  %v698 = vld [vmem:[%s7 + $0x160] sm:$0xff]
  %v699 = vld [vmem:[%s7 + $0x168] sm:$0xff]
  %v700 = vld [vmem:[%s7 + $0x170] sm:$0xff]
  %v701 = vld [vmem:[%s7 + $0x178] sm:$0xff]
  %v702 = vld [vmem:[%s8] sm:$0x1]
  %v704 = vlaneseq
  %v705 = vshrl.u32 %v704, 7
  %v706 = vsub.s32 0, %v705
  %v707 = vrot.slane %v702, %v706
  %709 = vmatprep.subr.mxu0 0.0
  %710 = vmatpush1.msra.mxu0 %v669
  %711 = vmatprep.subr.mxu0 0.0
  %712 = vmatpush1.msra.mxu0 %v668
  %713 = vmatprep.subr.mxu0 0.0
  %714 = vmatpush1.msra.mxu0 %v667
  %715 = vmatprep.subr.mxu0 0.0
  %716 = vmatpush1.msra.mxu0 %v666
  %717 = vmatprep.subr.mxu0 0.0
  %718 = vmatpush1.msra.mxu0 %v665
  %719 = vmatprep.subr.mxu0 0.0
  %720 = vmatpush1.msra.mxu0 %v664
  %721 = vmatprep.subr.mxu0 0.0
  %722 = vmatpush1.msra.mxu0 %v663
  %723 = vmatprep.subr.mxu0 0.0
  %724 = vmatpush1.msra.mxu0 %v662
  %725 = vmatprep.subr.mxu0 0.0
  %726 = vmatpush1.msra.mxu0 %v661
  %727 = vmatprep.subr.mxu0 0.0
  %728 = vmatpush1.msra.mxu0 %v660
  %729 = vmatprep.subr.mxu0 0.0
  %730 = vmatpush1.msra.mxu0 %v659
  %731 = vmatprep.subr.mxu0 0.0
  %732 = vmatpush1.msra.mxu0 %v658
  %733 = vmatprep.subr.mxu0 0.0
  %734 = vmatpush1.msra.mxu0 %v657
  %735 = vmatprep.subr.mxu0 0.0
  %736 = vmatpush1.msra.mxu0 %v656
  %737 = vmatprep.subr.mxu0 0.0
  %738 = vmatpush1.msra.mxu0 %v655
  %739 = vmatprep.subr.mxu0 0.0
  %740 = vmatpush1.msra.mxu0 %v654
  %741 = vmatprep.subr.mxu0 0.0
  %742 = vmatpush2.msra.mxu0 %v685
  %743 = vmatprep.subr.mxu0 0.0
  %744 = vmatpush2.msra.mxu0 %v684
  %745 = vmatprep.subr.mxu0 0.0
  %746 = vmatpush2.msra.mxu0 %v683
  %747 = vmatprep.subr.mxu0 0.0
  %748 = vmatpush2.msra.mxu0 %v682
  %749 = vmatprep.subr.mxu0 0.0
  %750 = vmatpush2.msra.mxu0 %v681
  %751 = vmatprep.subr.mxu0 0.0
  %752 = vmatpush2.msra.mxu0 %v680
  %753 = vmatprep.subr.mxu0 0.0
  %754 = vmatpush2.msra.mxu0 %v679
  %755 = vmatprep.subr.mxu0 0.0
  %756 = vmatpush2.msra.mxu0 %v678
  %757 = vmatprep.subr.mxu0 0.0
  %758 = vmatpush2.msra.mxu0 %v677
  %759 = vmatprep.subr.mxu0 0.0
  %760 = vmatpush2.msra.mxu0 %v676
  %761 = vmatprep.subr.mxu0 0.0
  %762 = vmatpush2.msra.mxu0 %v675
  %763 = vmatprep.subr.mxu0 0.0
  %764 = vmatpush2.msra.mxu0 %v674
  %765 = vmatprep.subr.mxu0 0.0
  %766 = vmatpush2.msra.mxu0 %v673
  %767 = vmatprep.subr.mxu0 0.0
  %768 = vmatpush2.msra.mxu0 %v672
  %769 = vmatprep.subr.mxu0 0.0
  %770 = vmatpush2.msra.mxu0 %v671
  %771 = vmatprep.subr.mxu0 0.0
  %772 = vmatpush2.msra.mxu0 %v670
  %773 = vmatprep.mubr.f32.mxu0 %v644
  %774 = vmatmul.mubr.f32.gmra.mxu0 %v642
  %v775 = vpop.f32.mrf.mxu0
  %v776 = vadd.f32 %v707, %v775
  %v777 = vpop.f32.mrf.mxu0
  %778 = vmatprep.mubr.f32.mxu0 %v645
  %779 = vmatmul.mubr.f32.gmra.mxu0 %v643
  %v780 = vpop.f32.mrf.mxu0
  %v781 = vadd.f32 %v707, %v780
  %v782 = vpop.f32.mrf.mxu0
  %783 = vmatprep.mubr.f32.mxu0 %v650
  %784 = vmatmul.mubr.f32.gmra.mxu0 %v648
  %v785 = vpop.f32.mrf.mxu0
  %v786 = vadd.f32 %v707, %v785
  %v787 = vpop.f32.mrf.mxu0
  %788 = vmatprep.mubr.f32.mxu0 %v651
  %789 = vmatmul.mubr.f32.gmra.mxu0 %v649
  %v790 = vpop.f32.mrf.mxu0
  %v791 = vadd.f32 %v707, %v790
  %v792 = vpop.f32.mrf.mxu0
  %793 = vdwg.mxu0
  %794 = vmatprep.subr.mxu0 0.0
  %795 = vmatpush1.msra.mxu0 %v701
  %796 = vmatprep.subr.mxu0 0.0
  %797 = vmatpush1.msra.mxu0 %v700
  %798 = vmatprep.subr.mxu0 0.0
  %799 = vmatpush1.msra.mxu0 %v699
  %800 = vmatprep.subr.mxu0 0.0
  %801 = vmatpush1.msra.mxu0 %v698
  %802 = vmatprep.subr.mxu0 0.0
  %803 = vmatpush1.msra.mxu0 %v697
  %804 = vmatprep.subr.mxu0 0.0
  %805 = vmatpush1.msra.mxu0 %v696
  %806 = vmatprep.subr.mxu0 0.0
  %807 = vmatpush1.msra.mxu0 %v695
  %808 = vmatprep.subr.mxu0 0.0
  %809 = vmatpush1.msra.mxu0 %v694
  %810 = vmatprep.subr.mxu0 0.0
  %811 = vmatpush1.msra.mxu0 %v693
  %812 = vmatprep.subr.mxu0 0.0
  %813 = vmatpush1.msra.mxu0 %v692
  %814 = vmatprep.subr.mxu0 0.0
  %815 = vmatpush1.msra.mxu0 %v691
  %816 = vmatprep.subr.mxu0 0.0
  %817 = vmatpush1.msra.mxu0 %v690
  %818 = vmatprep.subr.mxu0 0.0
  %819 = vmatpush1.msra.mxu0 %v689
  %820 = vmatprep.subr.mxu0 0.0
  %821 = vmatpush1.msra.mxu0 %v688
  %822 = vmatprep.subr.mxu0 0.0
  %823 = vmatpush1.msra.mxu0 %v687
  %824 = vmatprep.subr.mxu0 0.0
  %825 = vmatpush1.msra.mxu0 %v686
  %826 = vmatprep.subr.mxu0 0.0
  %827 = vmatpush2.msra.mxu0 0.0
  %828 = vmatprep.subr.mxu0 0.0
  %829 = vmatpush2.msra.mxu0 0.0
  %830 = vmatprep.subr.mxu0 0.0
  %831 = vmatpush2.msra.mxu0 0.0
  %832 = vmatprep.subr.mxu0 0.0
  %833 = vmatpush2.msra.mxu0 0.0
  %834 = vmatprep.subr.mxu0 0.0
  %835 = vmatpush2.msra.mxu0 0.0
  %836 = vmatprep.subr.mxu0 0.0
  %837 = vmatpush2.msra.mxu0 0.0
  %838 = vmatprep.subr.mxu0 0.0
  %839 = vmatpush2.msra.mxu0 0.0
  %840 = vmatprep.subr.mxu0 0.0
  %841 = vmatpush2.msra.mxu0 0.0
  %842 = vmatprep.subr.mxu0 0.0
  %843 = vmatpush2.msra.mxu0 0.0
  %844 = vmatprep.subr.mxu0 0.0
  %845 = vmatpush2.msra.mxu0 0.0
  %846 = vmatprep.subr.mxu0 0.0
  %847 = vmatpush2.msra.mxu0 0.0
  %848 = vmatprep.subr.mxu0 0.0
  %849 = vmatpush2.msra.mxu0 0.0
  %850 = vmatprep.subr.mxu0 0.0
  %851 = vmatpush2.msra.mxu0 0.0
  %852 = vmatprep.subr.mxu0 0.0
  %853 = vmatpush2.msra.mxu0 0.0
  %854 = vmatprep.subr.mxu0 0.0
  %855 = vmatpush2.msra.mxu0 0.0
  %856 = vmatprep.subr.mxu0 0.0
  %857 = vmatpush2.msra.mxu0 0.0
  %858 = vmatprep.mubr.f32.mxu0 0.0
  %859 = vmatmul.mubr.f32.gmra.mxu0 %v646
  %v860 = vpop.f32.mrf.mxu0
  %v861 = vadd.f32 %v776, %v860
  %v862 = vpop.f32.mrf.mxu0
  %863 = vmatprep.mubr.f32.mxu0 0.0
  %864 = vmatmul.mubr.f32.gmra.mxu0 %v647
  %v865 = vpop.f32.mrf.mxu0
  %v866 = vadd.f32 %v781, %v865
  %v867 = vpop.f32.mrf.mxu0
  %868 = vmatprep.mubr.f32.mxu0 0.0
  %869 = vmatmul.mubr.f32.gmra.mxu0 %v652
  %v870 = vpop.f32.mrf.mxu0
  %v871 = vadd.f32 %v786, %v870
  %v872 = vpop.f32.mrf.mxu0
  %873 = vmatprep.mubr.f32.mxu0 0.0
  %874 = vmatmul.mubr.f32.gmra.mxu0 %v653
  %v875 = vpop.f32.mrf.mxu0
  %v876 = vadd.f32 %v791, %v875
  %v877 = vpop.f32.mrf.mxu0
  %878 = vdwg.mxu0
  %879 = vst [vmem:[#allocation3 + $0x1] sm:$0xff] %v861
  %880 = vst [vmem:[#allocation3 + $0x9] sm:$0xff] %v866
  %881 = vst [vmem:[#allocation3 + $0x19] sm:$0xff] %v871
  %882 = vst [vmem:[#allocation3 + $0x21] sm:$0xff] %v876
  %v883 = vld [vmem:[#allocation2] ss:$2 sm:$0xff]
  %v884 = vld [vmem:[#allocation3] ss:$2 sm:$0xff]
  %s885 = scalar_lea.vmem [#allocation2], 1
  %v886 = vld [vmem:[%s885] ss:$2 sm:$0xff]
  %s887 = scalar_lea.vmem [#allocation3], 1
  %v888 = vld [vmem:[%s887] ss:$2 sm:$0xff]
  %s889 = scalar_lea.vmem [#allocation2], 2
  %v890 = vld [vmem:[%s889] ss:$2 sm:$0xff]
  %s891 = scalar_lea.vmem [#allocation3], 2
  %v892 = vld [vmem:[%s891] ss:$2 sm:$0xff]
  %s893 = scalar_lea.vmem [#allocation2], 24
  %v894 = vld [vmem:[%s893] ss:$2 sm:$0xff]
  %s895 = scalar_lea.vmem [#allocation3], 24
  %v896 = vld [vmem:[%s895] ss:$2 sm:$0xff]
  %s897 = scalar_lea.vmem [#allocation2], 25
  %v898 = vld [vmem:[%s897] ss:$2 sm:$0xff]
  %s899 = scalar_lea.vmem [#allocation3], 25
  %v900 = vld [vmem:[%s899] ss:$2 sm:$0xff]
  %s901 = scalar_lea.vmem [#allocation2], 26
  %v902 = vld [vmem:[%s901] ss:$2 sm:$0xff]
  %s903 = scalar_lea.vmem [#allocation3], 26
  %v904 = vld [vmem:[%s903] ss:$2 sm:$0xff]
  %v905 = vld [vmem:[%s9] sm:$0xff]
  %v906 = vld [vmem:[%s9 + $0x8] sm:$0xff]
  %v907 = vld [vmem:[%s9 + $0x10] sm:$0xff]
  %v908 = vld [vmem:[%s9 + $0x18] sm:$0xff]
  %v909 = vld [vmem:[%s9 + $0x20] sm:$0xff]
  %v910 = vld [vmem:[%s9 + $0x28] sm:$0xff]
  %v911 = vld [vmem:[%s9 + $0x30] sm:$0xff]
  %v912 = vld [vmem:[%s9 + $0x38] sm:$0xff]
  %v913 = vld [vmem:[%s9 + $0x40] sm:$0xff]
  %v914 = vld [vmem:[%s9 + $0x48] sm:$0xff]
  %v915 = vld [vmem:[%s9 + $0x50] sm:$0xff]
  %v916 = vld [vmem:[%s9 + $0x58] sm:$0xff]
  %v917 = vld [vmem:[%s9 + $0x60] sm:$0xff]
  %v918 = vld [vmem:[%s9 + $0x68] sm:$0xff]
  %v919 = vld [vmem:[%s9 + $0x70] sm:$0xff]
  %v920 = vld [vmem:[%s9 + $0x78] sm:$0xff]
  %v921 = vld [vmem:[%s9 + $0x80] sm:$0xff]
  %v922 = vld [vmem:[%s9 + $0x88] sm:$0xff]
  %v923 = vld [vmem:[%s9 + $0x90] sm:$0xff]
  %v924 = vld [vmem:[%s9 + $0x98] sm:$0xff]
  %v925 = vld [vmem:[%s9 + $0xa0] sm:$0xff]
  %v926 = vld [vmem:[%s9 + $0xa8] sm:$0xff]
  %v927 = vld [vmem:[%s9 + $0xb0] sm:$0xff]
  %v928 = vld [vmem:[%s9 + $0xb8] sm:$0xff]
  %v929 = vld [vmem:[%s9 + $0xc0] sm:$0xff]
  %v930 = vld [vmem:[%s9 + $0xc8] sm:$0xff]
  %v931 = vld [vmem:[%s9 + $0xd0] sm:$0xff]
  %v932 = vld [vmem:[%s9 + $0xd8] sm:$0xff]
  %v933 = vld [vmem:[%s9 + $0xe0] sm:$0xff]
  %v934 = vld [vmem:[%s9 + $0xe8] sm:$0xff]
  %v935 = vld [vmem:[%s9 + $0xf0] sm:$0xff]
  %v936 = vld [vmem:[%s9 + $0xf8] sm:$0xff]
  %v937 = vld [vmem:[%s9 + $0x100] sm:$0xff]
  %v938 = vld [vmem:[%s9 + $0x108] sm:$0xff]
  %v939 = vld [vmem:[%s9 + $0x110] sm:$0xff]
  %v940 = vld [vmem:[%s9 + $0x118] sm:$0xff]
  %v941 = vld [vmem:[%s9 + $0x120] sm:$0xff]
  %v942 = vld [vmem:[%s9 + $0x128] sm:$0xff]
  %v943 = vld [vmem:[%s9 + $0x130] sm:$0xff]
  %v944 = vld [vmem:[%s9 + $0x138] sm:$0xff]
  %v945 = vld [vmem:[%s9 + $0x140] sm:$0xff]
  %v946 = vld [vmem:[%s9 + $0x148] sm:$0xff]
  %v947 = vld [vmem:[%s9 + $0x150] sm:$0xff]
  %v948 = vld [vmem:[%s9 + $0x158] sm:$0xff]
  %v949 = vld [vmem:[%s9 + $0x160] sm:$0xff]
  %v950 = vld [vmem:[%s9 + $0x168] sm:$0xff]
  %v951 = vld [vmem:[%s9 + $0x170] sm:$0xff]
  %v952 = vld [vmem:[%s9 + $0x178] sm:$0xff]
  %v953 = vld [vmem:[%s9 + $0x180] sm:$0xff]
  %v954 = vld [vmem:[%s9 + $0x188] sm:$0xff]
  %v955 = vld [vmem:[%s9 + $0x190] sm:$0xff]
  %v956 = vld [vmem:[%s9 + $0x198] sm:$0xff]
  %v957 = vld [vmem:[%s9 + $0x1a0] sm:$0xff]
  %v958 = vld [vmem:[%s9 + $0x1a8] sm:$0xff]
  %v959 = vld [vmem:[%s9 + $0x1b0] sm:$0xff]
  %v960 = vld [vmem:[%s9 + $0x1b8] sm:$0xff]
  %v961 = vld [vmem:[%s9 + $0x1c0] sm:$0xff]
  %v962 = vld [vmem:[%s9 + $0x1c8] sm:$0xff]
  %v963 = vld [vmem:[%s9 + $0x1d0] sm:$0xff]
  %v964 = vld [vmem:[%s9 + $0x1d8] sm:$0xff]
  %v965 = vld [vmem:[%s9 + $0x1e0] sm:$0xff]
  %v966 = vld [vmem:[%s9 + $0x1e8] sm:$0xff]
  %v967 = vld [vmem:[%s9 + $0x1f0] sm:$0xff]
  %v968 = vld [vmem:[%s9 + $0x1f8] sm:$0xff]
  %v969 = vld [vmem:[%s9 + $0x200] sm:$0xff]
  %v970 = vld [vmem:[%s9 + $0x208] sm:$0xff]
  %v971 = vld [vmem:[%s9 + $0x210] sm:$0xff]
  %v972 = vld [vmem:[%s9 + $0x218] sm:$0xff]
  %v973 = vld [vmem:[%s9 + $0x220] sm:$0xff]
  %v974 = vld [vmem:[%s9 + $0x228] sm:$0xff]
  %v975 = vld [vmem:[%s9 + $0x230] sm:$0xff]
  %v976 = vld [vmem:[%s9 + $0x238] sm:$0xff]
  %v977 = vld [vmem:[%s9 + $0x240] sm:$0xff]
  %v978 = vld [vmem:[%s9 + $0x248] sm:$0xff]
  %v979 = vld [vmem:[%s9 + $0x250] sm:$0xff]
  %v980 = vld [vmem:[%s9 + $0x258] sm:$0xff]
  %v981 = vld [vmem:[%s9 + $0x260] sm:$0xff]
  %v982 = vld [vmem:[%s9 + $0x268] sm:$0xff]
  %v983 = vld [vmem:[%s9 + $0x270] sm:$0xff]
  %v984 = vld [vmem:[%s9 + $0x278] sm:$0xff]
  %v985 = vld [vmem:[%s9 + $0x280] sm:$0xff]
  %v986 = vld [vmem:[%s9 + $0x288] sm:$0xff]
  %v987 = vld [vmem:[%s9 + $0x290] sm:$0xff]
  %v988 = vld [vmem:[%s9 + $0x298] sm:$0xff]
  %v989 = vld [vmem:[%s9 + $0x2a0] sm:$0xff]
  %v990 = vld [vmem:[%s9 + $0x2a8] sm:$0xff]
  %v991 = vld [vmem:[%s9 + $0x2b0] sm:$0xff]
  %v992 = vld [vmem:[%s9 + $0x2b8] sm:$0xff]
  %v993 = vld [vmem:[%s9 + $0x2c0] sm:$0xff]
  %v994 = vld [vmem:[%s9 + $0x2c8] sm:$0xff]
  %v995 = vld [vmem:[%s9 + $0x2d0] sm:$0xff]
  %v996 = vld [vmem:[%s9 + $0x2d8] sm:$0xff]
  %v997 = vld [vmem:[%s9 + $0x2e0] sm:$0xff]
  %v998 = vld [vmem:[%s9 + $0x2e8] sm:$0xff]
  %v999 = vld [vmem:[%s9 + $0x2f0] sm:$0xff]
  %v1000 = vld [vmem:[%s9 + $0x2f8] sm:$0xff]
  %v1001 = vld [vmem:[%s10] sm:$0x1]
  %v1003 = vlaneseq
  %v1004 = vshrl.u32 %v1003, 7
  %v1005 = vsub.s32 0, %v1004
  %v1006 = vrot.slane %v1001, %v1005
  %1008 = vmatprep.subr.mxu0 0.0
  %1009 = vmatpush1.msra.mxu0 %v920
  %1010 = vmatprep.subr.mxu0 0.0
  %1011 = vmatpush1.msra.mxu0 %v919
  %1012 = vmatprep.subr.mxu0 0.0
  %1013 = vmatpush1.msra.mxu0 %v918
  %1014 = vmatprep.subr.mxu0 0.0
  %1015 = vmatpush1.msra.mxu0 %v917
  %1016 = vmatprep.subr.mxu0 0.0
  %1017 = vmatpush1.msra.mxu0 %v916
  %1018 = vmatprep.subr.mxu0 0.0
  %1019 = vmatpush1.msra.mxu0 %v915
  %1020 = vmatprep.subr.mxu0 0.0
  %1021 = vmatpush1.msra.mxu0 %v914
  %1022 = vmatprep.subr.mxu0 0.0
  %1023 = vmatpush1.msra.mxu0 %v913
  %1024 = vmatprep.subr.mxu0 0.0
  %1025 = vmatpush1.msra.mxu0 %v912
  %1026 = vmatprep.subr.mxu0 0.0
  %1027 = vmatpush1.msra.mxu0 %v911
  %1028 = vmatprep.subr.mxu0 0.0
  %1029 = vmatpush1.msra.mxu0 %v910
  %1030 = vmatprep.subr.mxu0 0.0
  %1031 = vmatpush1.msra.mxu0 %v909
  %1032 = vmatprep.subr.mxu0 0.0
  %1033 = vmatpush1.msra.mxu0 %v908
  %1034 = vmatprep.subr.mxu0 0.0
  %1035 = vmatpush1.msra.mxu0 %v907
  %1036 = vmatprep.subr.mxu0 0.0
  %1037 = vmatpush1.msra.mxu0 %v906
  %1038 = vmatprep.subr.mxu0 0.0
  %1039 = vmatpush1.msra.mxu0 %v905
  %1040 = vmatprep.subr.mxu0 0.0
  %1041 = vmatpush2.msra.mxu0 %v936
  %1042 = vmatprep.subr.mxu0 0.0
  %1043 = vmatpush2.msra.mxu0 %v935
  %1044 = vmatprep.subr.mxu0 0.0
  %1045 = vmatpush2.msra.mxu0 %v934
  %1046 = vmatprep.subr.mxu0 0.0
  %1047 = vmatpush2.msra.mxu0 %v933
  %1048 = vmatprep.subr.mxu0 0.0
  %1049 = vmatpush2.msra.mxu0 %v932
  %1050 = vmatprep.subr.mxu0 0.0
  %1051 = vmatpush2.msra.mxu0 %v931
  %1052 = vmatprep.subr.mxu0 0.0
  %1053 = vmatpush2.msra.mxu0 %v930
  %1054 = vmatprep.subr.mxu0 0.0
  %1055 = vmatpush2.msra.mxu0 %v929
  %1056 = vmatprep.subr.mxu0 0.0
  %1057 = vmatpush2.msra.mxu0 %v928
  %1058 = vmatprep.subr.mxu0 0.0
  %1059 = vmatpush2.msra.mxu0 %v927
  %1060 = vmatprep.subr.mxu0 0.0
  %1061 = vmatpush2.msra.mxu0 %v926
  %1062 = vmatprep.subr.mxu0 0.0
  %1063 = vmatpush2.msra.mxu0 %v925
  %1064 = vmatprep.subr.mxu0 0.0
  %1065 = vmatpush2.msra.mxu0 %v924
  %1066 = vmatprep.subr.mxu0 0.0
  %1067 = vmatpush2.msra.mxu0 %v923
  %1068 = vmatprep.subr.mxu0 0.0
  %1069 = vmatpush2.msra.mxu0 %v922
  %1070 = vmatprep.subr.mxu0 0.0
  %1071 = vmatpush2.msra.mxu0 %v921
  %1072 = vmatprep.mubr.f32.mxu0 %v884
  %1073 = vmatmul.mubr.f32.gmra.mxu0 %v883
  %v1074 = vpop.f32.mrf.mxu0
  %v1075 = vadd.f32 %v1006, %v1074
  %v1076 = vpop.f32.mrf.mxu0
  %1077 = vmatprep.mubr.f32.mxu0 %v896
  %1078 = vmatmul.mubr.f32.gmra.mxu0 %v894
  %v1079 = vpop.f32.mrf.mxu0
  %v1080 = vadd.f32 %v1006, %v1079
  %v1081 = vpop.f32.mrf.mxu0
  %1082 = vdwg.mxu0
  %1083 = vmatprep.subr.mxu0 0.0
  %1084 = vmatpush1.msra.mxu0 %v952
  %1085 = vmatprep.subr.mxu0 0.0
  %1086 = vmatpush1.msra.mxu0 %v951
  %1087 = vmatprep.subr.mxu0 0.0
  %1088 = vmatpush1.msra.mxu0 %v950
  %1089 = vmatprep.subr.mxu0 0.0
  %1090 = vmatpush1.msra.mxu0 %v949
  %1091 = vmatprep.subr.mxu0 0.0
  %1092 = vmatpush1.msra.mxu0 %v948
  %1093 = vmatprep.subr.mxu0 0.0
  %1094 = vmatpush1.msra.mxu0 %v947
  %1095 = vmatprep.subr.mxu0 0.0
  %1096 = vmatpush1.msra.mxu0 %v946
  %1097 = vmatprep.subr.mxu0 0.0
  %1098 = vmatpush1.msra.mxu0 %v945
  %1099 = vmatprep.subr.mxu0 0.0
  %1100 = vmatpush1.msra.mxu0 %v944
  %1101 = vmatprep.subr.mxu0 0.0
  %1102 = vmatpush1.msra.mxu0 %v943
  %1103 = vmatprep.subr.mxu0 0.0
  %1104 = vmatpush1.msra.mxu0 %v942
  %1105 = vmatprep.subr.mxu0 0.0
  %1106 = vmatpush1.msra.mxu0 %v941
  %1107 = vmatprep.subr.mxu0 0.0
  %1108 = vmatpush1.msra.mxu0 %v940
  %1109 = vmatprep.subr.mxu0 0.0
  %1110 = vmatpush1.msra.mxu0 %v939
  %1111 = vmatprep.subr.mxu0 0.0
  %1112 = vmatpush1.msra.mxu0 %v938
  %1113 = vmatprep.subr.mxu0 0.0
  %1114 = vmatpush1.msra.mxu0 %v937
  %1115 = vmatprep.subr.mxu0 0.0
  %1116 = vmatpush2.msra.mxu0 %v968
  %1117 = vmatprep.subr.mxu0 0.0
  %1118 = vmatpush2.msra.mxu0 %v967
  %1119 = vmatprep.subr.mxu0 0.0
  %1120 = vmatpush2.msra.mxu0 %v966
  %1121 = vmatprep.subr.mxu0 0.0
  %1122 = vmatpush2.msra.mxu0 %v965
  %1123 = vmatprep.subr.mxu0 0.0
  %1124 = vmatpush2.msra.mxu0 %v964
  %1125 = vmatprep.subr.mxu0 0.0
  %1126 = vmatpush2.msra.mxu0 %v963
  %1127 = vmatprep.subr.mxu0 0.0
  %1128 = vmatpush2.msra.mxu0 %v962
  %1129 = vmatprep.subr.mxu0 0.0
  %1130 = vmatpush2.msra.mxu0 %v961
  %1131 = vmatprep.subr.mxu0 0.0
  %1132 = vmatpush2.msra.mxu0 %v960
  %1133 = vmatprep.subr.mxu0 0.0
  %1134 = vmatpush2.msra.mxu0 %v959
  %1135 = vmatprep.subr.mxu0 0.0
  %1136 = vmatpush2.msra.mxu0 %v958
  %1137 = vmatprep.subr.mxu0 0.0
  %1138 = vmatpush2.msra.mxu0 %v957
  %1139 = vmatprep.subr.mxu0 0.0
  %1140 = vmatpush2.msra.mxu0 %v956
  %1141 = vmatprep.subr.mxu0 0.0
  %1142 = vmatpush2.msra.mxu0 %v955
  %1143 = vmatprep.subr.mxu0 0.0
  %1144 = vmatpush2.msra.mxu0 %v954
  %1145 = vmatprep.subr.mxu0 0.0
  %1146 = vmatpush2.msra.mxu0 %v953
  %1147 = vmatprep.mubr.f32.mxu0 %v888
  %1148 = vmatmul.mubr.f32.gmra.mxu0 %v886
  %v1149 = vpop.f32.mrf.mxu0
  %v1150 = vadd.f32 %v1075, %v1149
  %v1151 = vpop.f32.mrf.mxu0
  %1152 = vmatprep.mubr.f32.mxu0 %v900
  %1153 = vmatmul.mubr.f32.gmra.mxu0 %v898
  %v1154 = vpop.f32.mrf.mxu0
  %v1155 = vadd.f32 %v1080, %v1154
  %v1156 = vpop.f32.mrf.mxu0
  %1157 = vdwg.mxu0
  %1158 = vmatprep.subr.mxu0 0.0
  %1159 = vmatpush1.msra.mxu0 %v984
  %1160 = vmatprep.subr.mxu0 0.0
  %1161 = vmatpush1.msra.mxu0 %v983
  %1162 = vmatprep.subr.mxu0 0.0
  %1163 = vmatpush1.msra.mxu0 %v982
  %1164 = vmatprep.subr.mxu0 0.0
  %1165 = vmatpush1.msra.mxu0 %v981
  %1166 = vmatprep.subr.mxu0 0.0
  %1167 = vmatpush1.msra.mxu0 %v980
  %1168 = vmatprep.subr.mxu0 0.0
  %1169 = vmatpush1.msra.mxu0 %v979
  %1170 = vmatprep.subr.mxu0 0.0
  %1171 = vmatpush1.msra.mxu0 %v978
  %1172 = vmatprep.subr.mxu0 0.0
  %1173 = vmatpush1.msra.mxu0 %v977
  %1174 = vmatprep.subr.mxu0 0.0
  %1175 = vmatpush1.msra.mxu0 %v976
  %1176 = vmatprep.subr.mxu0 0.0
  %1177 = vmatpush1.msra.mxu0 %v975
  %1178 = vmatprep.subr.mxu0 0.0
  %1179 = vmatpush1.msra.mxu0 %v974
  %1180 = vmatprep.subr.mxu0 0.0
  %1181 = vmatpush1.msra.mxu0 %v973
  %1182 = vmatprep.subr.mxu0 0.0
  %1183 = vmatpush1.msra.mxu0 %v972
  %1184 = vmatprep.subr.mxu0 0.0
  %1185 = vmatpush1.msra.mxu0 %v971
  %1186 = vmatprep.subr.mxu0 0.0
  %1187 = vmatpush1.msra.mxu0 %v970
  %1188 = vmatprep.subr.mxu0 0.0
  %1189 = vmatpush1.msra.mxu0 %v969
  %1190 = vmatprep.subr.mxu0 0.0
  %1191 = vmatpush2.msra.mxu0 %v1000
  %1192 = vmatprep.subr.mxu0 0.0
  %1193 = vmatpush2.msra.mxu0 %v999
  %1194 = vmatprep.subr.mxu0 0.0
  %1195 = vmatpush2.msra.mxu0 %v998
  %1196 = vmatprep.subr.mxu0 0.0
  %1197 = vmatpush2.msra.mxu0 %v997
  %1198 = vmatprep.subr.mxu0 0.0
  %1199 = vmatpush2.msra.mxu0 %v996
  %1200 = vmatprep.subr.mxu0 0.0
  %1201 = vmatpush2.msra.mxu0 %v995
  %1202 = vmatprep.subr.mxu0 0.0
  %1203 = vmatpush2.msra.mxu0 %v994
  %1204 = vmatprep.subr.mxu0 0.0
  %1205 = vmatpush2.msra.mxu0 %v993
  %1206 = vmatprep.subr.mxu0 0.0
  %1207 = vmatpush2.msra.mxu0 %v992
  %1208 = vmatprep.subr.mxu0 0.0
  %1209 = vmatpush2.msra.mxu0 %v991
  %1210 = vmatprep.subr.mxu0 0.0
  %1211 = vmatpush2.msra.mxu0 %v990
  %1212 = vmatprep.subr.mxu0 0.0
  %1213 = vmatpush2.msra.mxu0 %v989
  %1214 = vmatprep.subr.mxu0 0.0
  %1215 = vmatpush2.msra.mxu0 %v988
  %1216 = vmatprep.subr.mxu0 0.0
  %1217 = vmatpush2.msra.mxu0 %v987
  %1218 = vmatprep.subr.mxu0 0.0
  %1219 = vmatpush2.msra.mxu0 %v986
  %1220 = vmatprep.subr.mxu0 0.0
  %1221 = vmatpush2.msra.mxu0 %v985
  %1222 = vmatprep.mubr.f32.mxu0 %v892
  %1223 = vmatmul.mubr.f32.gmra.mxu0 %v890
  %v1224 = vpop.f32.mrf.mxu0
  %v1225 = vadd.f32 %v1150, %v1224
  %v1226 = vpop.f32.mrf.mxu0
  %1227 = vmatprep.mubr.f32.mxu0 %v904
  %1228 = vmatmul.mubr.f32.gmra.mxu0 %v902
  %v1229 = vpop.f32.mrf.mxu0
  %v1230 = vadd.f32 %v1155, %v1229
  %v1231 = vpop.f32.mrf.mxu0
  %1232 = vdwg.mxu0
  %1234 = vrot.lane.b32.xlu0 %v1230, 64
  %v1235 = vpop.permute.xlu0 %1234
  %vm1237 = vcmask 523264
  %v1238 = vsel %vm1237, %v1225, %v1235
  %1239 = vst [vmem:[%s11] sm:$0xff] %v1238
  // Predicated region
  $region46: #{residual_block_down.1} parent=0 // pred_check
    _
  $region47: #{residual_block_down.1} parent=0 // pred_check_branch
    %1241 = sbr.rel (0) target = $region49
  $region48: #{residual_block_down.1} parent=0 // pred_region
    _
  $region49: #{residual_block_down.1} parent=0 // pred_fallthru
    _
  // Predicated region
  $region50: #{residual_block_down.1} parent=0 // pred_check
    _
  $region51: #{residual_block_down.1} parent=0 // pred_check_branch
    %1243 = sbr.rel (0) target = $region53
  $region52: #{residual_block_down.1} parent=0 // pred_region
    _
  $region53: #{residual_block_down.1} parent=0 // pred_fallthru
    _

</llo_original>
